<compile_context>
chip_gen: v6e
topology: v6e:2x2x1
jax: 0.10.0
libtpu: 0.0.40
codegen_flags: <defaults>
</compile_context>

<pallas_src>
import functools
import math

import jax
import jax.numpy as jnp
from jax.experimental import pallas as pl
from jax.experimental.pallas import tpu as pltpu


C_PAD = 128  # lane-dense channel padding used for every layer


def _mish(y):
    # mish(y) = y * tanh(softplus(y)) with torch's softplus threshold-20 fast path.
    # tanh(log1p(e^y)) == ((1+e^y)^2 - 1) / ((1+e^y)^2 + 1): one EUP exp + one near-free
    # approx reciprocal instead of exp + log1p + tanh (3 EUP pushes).
    t = jnp.exp(jnp.minimum(y, 20.0))
    q = t * (t + 2.0)                       # (1 + e^y)^2 - 1
    return y * q * pl.reciprocal(q + 2.0, approx=True)


def _fused_lte_kernel(x_ref, w_ref, shift_ref, o_ref, slab_ref, *,
                      L, K, padr, num_layers):
    """Fused (conv1d 'same' + BN shift + mish) x num_layers for one batch tile.

    x_ref:     (nb, L, C_PAD)               bf16  channels-last, lane-padded input tile
    w_ref:     (num_layers*K, C_PAD, C_PAD) bf16  per-tap weights, BN scale folded in
    shift_ref: (num_layers, 1, C_PAD)       f32   folded conv-bias + BN shift
    o_ref:     (nb, L, C_PAD)               f32   lane-dense output tile
    slab_ref:  (nb, L + 2*padr, C_PAD)      bf16 VMEM  activation slab, per-segment halo
    """
    nb = x_ref.shape[0]
    pad = K // 2
    rows = nb * L

    # Zero only the halo rows; interior writes below never touch them, so every shifted
    # tap slice reads either this segment's rows or its own zero halo ('same' conv
    # padding AND batch-segment isolation with no masks / selects).
    if padr > 0:
        halo_zeros = jnp.zeros((nb, padr, C_PAD), dtype=slab_ref.dtype)
        slab_ref[:, :padr, :] = halo_zeros
        slab_ref[:, padr + L:, :] = halo_zeros
    slab_ref[:, padr:padr + L, :] = x_ref[...]

    for layer in range(num_layers):            # static & small -> unrolled
        # K accumulating MXU matmuls reading the slab directly (no im2col temporary).
        acc = None
        for k in range(K):
            off = padr + k - pad
            tap = slab_ref[:, off:off + L, :].reshape(rows, C_PAD)     # bf16
            part = jnp.dot(tap, w_ref[layer * K + k],
                           preferred_element_type=jnp.float32)
            acc = part if acc is None else acc + part
        y = acc + shift_ref[layer]             # folded conv-bias + BN shift (f32)
        act = _mish(y)                         # f32; dropout = identity at eval

        if layer + 1 < num_layers:
            slab_ref[:, padr:padr + L, :] = act.reshape(nb, L, C_PAD).astype(slab_ref.dtype)
        else:
            o_ref[...] = act.reshape(nb, L, C_PAD).astype(o_ref.dtype)   # lane-dense store


def _pick_batch_block(N, L, padr, target_rows=1024):
    """Largest batch sub-block (divisor of N) whose slab rows stay near target_rows,
    while keeping >= 2 grid steps when N >= 2 so the 'parallel' axis can use both v7x
    TensorCores, and capping the per-step VMEM footprint."""
    Lh = L + 2 * padr
    best = 1
    for nb in range(1, N + 1):
        if N % nb:
            continue
        if N >= 2 and (N // nb) < 2:
            continue                          # keep at least 2 parallel grid steps
        if nb * Lh > max(target_rows, Lh):
            continue                          # cap per-step VMEM footprint
        best = nb
    return best


def pack_params(params, eps=1e-5):
    """One-time packing: per-tap bf16 conv weights with the BN scale folded in, plus the
    folded conv-bias + BN shift (f32); channel dims zero-padded to C_PAD lanes."""
    ws, shifts = [], []
    for (w, b, gamma, beta, rmean, rvar) in params:
        k_sz, cin, cout = w.shape
        assert cin <= C_PAD and cout <= C_PAD
        sc = gamma / jnp.sqrt(rvar + eps)
        wf = w * sc[None, None, :]                          # fold BN scale into weights
        wp = jnp.pad(wf, ((0, 0), (0, C_PAD - cin), (0, C_PAD - cout)))
        ws.append(wp)
        sh = (b - rmean) * sc + beta
        shifts.append(jnp.pad(sh, (0, C_PAD - cout)).reshape(1, C_PAD))
    num_layers, k_sz = len(params), params[0][0].shape[0]
    w_packed = jnp.stack(ws).reshape(num_layers * k_sz, C_PAD, C_PAD).astype(jnp.bfloat16)
    return w_packed, jnp.stack(shifts).astype(jnp.float32)


@functools.partial(jax.jit, static_argnames=("out_channels",))
def local_temporal_extraction(x_ncl, w_packed, shift, *, out_channels):
    """Matches LocalTemporalExtraction.forward in eval mode. x_ncl: [N, C_in, L]."""
    N, cin, L = x_ncl.shape
    num_layers = shift.shape[0]
    K = w_packed.shape[0] // num_layers
    pad = K // 2
    padr = (-(-pad // 8) * 8) if pad > 0 else 0             # sublane-aligned halo rows

    # channels-last, lane-padded to 128, bf16 at the HBM boundary (bf16 is the matmul
    # input dtype anyway -> halves input HBM bytes).
    x = jnp.transpose(x_ncl, (0, 2, 1))
    x = jnp.pad(x, ((0, 0), (0, 0), (0, C_PAD - cin))).astype(jnp.bfloat16)

    nb = _pick_batch_block(N, L, padr)
    grid = (N // nb,)

    kernel = functools.partial(_fused_lte_kernel, L=L, K=K, padr=padr,
                               num_layers=num_layers)
    out = pl.pallas_call(
        kernel,
        out_shape=jax.ShapeDtypeStruct((N, L, C_PAD), jnp.float32),
        grid_spec=pltpu.PrefetchScalarGridSpec(
            num_scalar_prefetch=0,
            grid=grid,
            in_specs=[
                pl.BlockSpec((nb, L, C_PAD), lambda i: (i, 0, 0)),                # x tile
                pl.BlockSpec((num_layers * K, C_PAD, C_PAD), lambda i: (0, 0, 0)),
                pl.BlockSpec((num_layers, 1, C_PAD), lambda i: (0, 0, 0)),
            ],
            out_specs=pl.BlockSpec((nb, L, C_PAD), lambda i: (i, 0, 0)),
            scratch_shapes=[pltpu.VMEM((nb, L + 2 * padr, C_PAD), jnp.bfloat16)],
        ),
        compiler_params=pltpu.CompilerParams(
            dimension_semantics=("parallel",),
            vmem_limit_bytes=32 * 1024 * 1024,   # raise v5e's 16 MiB scoped default
        ),
    )(x, w_packed, shift)

    out = out[:, :, :out_channels]
    return jnp.transpose(out, (0, 2, 1))                    # -> [N, C_out, L]


def init_params(key, in_dim, feat_chs, kernel_size):
    """Deterministic parameters matching the module's shapes/init (xavier_uniform conv,
    torch-default conv bias, BN buffers perturbed so the folded path is exercised)."""
    params = []
    in_chs = [in_dim] + list(feat_chs)
    for cin, cout in zip(in_chs[:-1], in_chs[1:]):
        key, kw, kb, kg, kbe, km, kv = jax.random.split(key, 7)
        fan_in, fan_out = cin * kernel_size, cout * kernel_size
        a = math.sqrt(6.0 / (fan_in + fan_out))             # xavier_uniform, gain=1
        w = jax.random.uniform(kw, (kernel_size, cin, cout), jnp.float32, -a, a)
        bb = 1.0 / math.sqrt(fan_in)                        # torch Conv1d default bias init
        b = jax.random.uniform(kb, (cout,), jnp.float32, -bb, bb)
        gamma = 1.0 + 0.1 * jax.random.normal(kg, (cout,), jnp.float32)
        beta = 0.1 * jax.random.normal(kbe, (cout,), jnp.float32)
        rmean = 0.1 * jax.random.normal(km, (cout,), jnp.float32)
        rvar = jax.random.uniform(kv, (cout,), jnp.float32, 0.5, 1.5)
        params.append((w, b, gamma, beta, rmean, rvar))
    return params


def _reference(x_ncl, params, eps=1e-5):
    """Pure-JAX reference mirroring the kernel's numeric path (same BN-scale fold into
    bf16 weights, same bf16 activation cast before each matmul); exact mish."""
    x = jnp.transpose(x_ncl, (0, 2, 1))
    for (w, b, gamma, beta, rmean, rvar) in params:
        K = w.shape[0]
        pad = K // 2
        L = x.shape[1]
        sc = gamma / jnp.sqrt(rvar + eps)
        wb = (w * sc[None, None, :]).astype(jnp.bfloat16)
        sh = (b - rmean) * sc + beta
        xp = jnp.pad(x, ((0, 0), (pad, pad), (0, 0))).astype(jnp.bfloat16)
        y = sh[None, None, :] + sum(
            jnp.einsum("nlc,cd->nld", xp[:, k:k + L, :], wb[k],
                       preferred_element_type=jnp.float32)
            for k in range(K))
        sp = jnp.where(y > 20.0, y, jnp.log1p(jnp.exp(jnp.minimum(y, 20.0))))
        x = y * jnp.tanh(sp)
    return jnp.transpose(x, (0, 2, 1))


if __name__ == "__main__":
    key = jax.random.PRNGKey(0)
    N, in_dim, seq_len = 2, 4, 16
    feat_chs = [8, 16, 32]
    kernel_size = 5

    kx, kp = jax.random.split(key)
    x = jax.random.normal(kx, (N, in_dim, seq_len), jnp.float32)     # [N, C_in, L]
    params = init_params(kp, in_dim, feat_chs, kernel_size)
    w_packed, shift = pack_params(params)

    out = jax.block_until_ready(
        local_temporal_extraction(x, w_packed, shift, out_channels=feat_chs[-1]))
    assert out.shape == (N, feat_chs[-1], seq_len), out.shape

    ref = jax.block_until_ready(_reference(x, params))
    # Tolerance budget: the reference mirrors the kernel's bf16 weight/activation casts;
    # remaining slack covers the approx EUP reciprocal in mish and accumulation order.
    max_err = float(jnp.max(jnp.abs(out - ref)))
    assert jnp.allclose(out, ref, atol=1e-2, rtol=1e-2), max_err

    print("KERNEL_OK")
</pallas_src>

<mosaic_0001>
module attributes {stable_mosaic.version = 11 : i64} {
  func.func @_fused_lte_kernel(%arg0: i32, %arg1: memref<1x16x128xbf16, #tpu.memory_space<vmem>>, %arg2: memref<15x128x128xbf16, #tpu.memory_space<vmem>>, %arg3: memref<3x1x128xf32, #tpu.memory_space<vmem>>, %arg4: memref<1x16x128xf32, #tpu.memory_space<vmem>>, %arg5: memref<1x32x128xbf16, #tpu.memory_space<vmem>>) attributes {dimension_semantics = [#tpu.dimension_semantics<parallel>], iteration_bounds = array<i64: 2>, scalar_prefetch = 0 : i64, scratch_operands = 1 : i64, tpu.core_type = #tpu.core_type<tc>, window_params = [{transform_indices = @transform_0, window_bounds = array<i64: 1, 16, 128>}, {pipeline_mode = #tpu.pipeline_mode<synchronous>, transform_indices = @transform_1, window_bounds = array<i64: 15, 128, 128>}, {pipeline_mode = #tpu.pipeline_mode<synchronous>, transform_indices = @transform_2, window_bounds = array<i64: 3, 1, 128>}, {transform_indices = @transform_3, window_bounds = array<i64: 1, 16, 128>}]} {
    %cst = arith.constant 0.000000e+00 : bf16
    %0 = vector.broadcast %cst : bf16 to vector<1x8x128xbf16>
    %c0 = arith.constant 0 : index
    %c0_0 = arith.constant 0 : index
    %c0_1 = arith.constant 0 : index
    %1 = vector.load %arg5[%c0, %c0_0, %c0_1] : memref<1x32x128xbf16, #tpu.memory_space<vmem>>, vector<1x8x128xbf16>
    tpu.vector_store %arg5[%c0, %c0_0, %c0_1], %0 {strides = array<i32>} : memref<1x32x128xbf16, #tpu.memory_space<vmem>>, vector<1x8x128xbf16>,
    %c0_2 = arith.constant 0 : index
    %c24 = arith.constant 24 : index
    %c0_3 = arith.constant 0 : index
    %2 = vector.load %arg5[%c0_2, %c24, %c0_3] : memref<1x32x128xbf16, #tpu.memory_space<vmem>>, vector<1x8x128xbf16>
    tpu.vector_store %arg5[%c0_2, %c24, %c0_3], %0 {strides = array<i32>} : memref<1x32x128xbf16, #tpu.memory_space<vmem>>, vector<1x8x128xbf16>,
    %c0_4 = arith.constant 0 : index
    %c0_5 = arith.constant 0 : index
    %c0_6 = arith.constant 0 : index
    %3 = vector.load %arg1[%c0_4, %c0_5, %c0_6] : memref<1x16x128xbf16, #tpu.memory_space<vmem>>, vector<1x16x128xbf16>
    %c0_7 = arith.constant 0 : index
    %c8 = arith.constant 8 : index
    %c0_8 = arith.constant 0 : index
    %4 = vector.load %arg5[%c0_7, %c8, %c0_8] : memref<1x32x128xbf16, #tpu.memory_space<vmem>>, vector<1x16x128xbf16>
    tpu.vector_store %arg5[%c0_7, %c8, %c0_8], %3 {strides = array<i32>} : memref<1x32x128xbf16, #tpu.memory_space<vmem>>, vector<1x16x128xbf16>,
    %c0_9 = arith.constant 0 : index
    %c6 = arith.constant 6 : index
    %c0_10 = arith.constant 0 : index
    %5 = vector.load %arg5[%c0_9, %c6, %c0_10] : memref<1x32x128xbf16, #tpu.memory_space<vmem>>, vector<1x16x128xbf16>
    %6 = vector.shape_cast %5 : vector<1x16x128xbf16> to vector<16x128xbf16>
    %c0_11 = arith.constant 0 : index
    %c0_12 = arith.constant 0 : index
    %c0_13 = arith.constant 0 : index
    %7 = vector.load %arg2[%c0_11, %c0_12, %c0_13] : memref<15x128x128xbf16, #tpu.memory_space<vmem>>, vector<1x128x128xbf16>
    %8 = vector.shape_cast %7 : vector<1x128x128xbf16> to vector<128x128xbf16>
    %cst_14 = arith.constant dense<0.000000e+00> : vector<16x128xf32>
    %9 = tpu.matmul %6, %8, %cst_14 {dimension_numbers = #tpu.dot_dimension_numbers<[1], [0], [0], [1], [0, 0, 1, 1], [], []>} : vector<16x128xbf16>, vector<128x128xbf16>, vector<16x128xf32> -> vector<16x128xf32>
    %c0_15 = arith.constant 0 : index
    %c7 = arith.constant 7 : index
    %c0_16 = arith.constant 0 : index
    %10 = vector.load %arg5[%c0_15, %c7, %c0_16] : memref<1x32x128xbf16, #tpu.memory_space<vmem>>, vector<1x16x128xbf16>
    %11 = vector.shape_cast %10 : vector<1x16x128xbf16> to vector<16x128xbf16>
    %c1 = arith.constant 1 : index
    %c0_17 = arith.constant 0 : index
    %c0_18 = arith.constant 0 : index
    %12 = vector.load %arg2[%c1, %c0_17, %c0_18] : memref<15x128x128xbf16, #tpu.memory_space<vmem>>, vector<1x128x128xbf16>
    %13 = vector.shape_cast %12 : vector<1x128x128xbf16> to vector<128x128xbf16>
    %cst_19 = arith.constant dense<0.000000e+00> : vector<16x128xf32>
    %14 = tpu.matmul %11, %13, %cst_19 {dimension_numbers = #tpu.dot_dimension_numbers<[1], [0], [0], [1], [0, 0, 1, 1], [], []>} : vector<16x128xbf16>, vector<128x128xbf16>, vector<16x128xf32> -> vector<16x128xf32>
    %15 = arith.addf %9, %14 : vector<16x128xf32>
    %c0_20 = arith.constant 0 : index
    %c8_21 = arith.constant 8 : index
    %c0_22 = arith.constant 0 : index
    %16 = vector.load %arg5[%c0_20, %c8_21, %c0_22] : memref<1x32x128xbf16, #tpu.memory_space<vmem>>, vector<1x16x128xbf16>
    %17 = vector.shape_cast %16 : vector<1x16x128xbf16> to vector<16x128xbf16>
    %c2 = arith.constant 2 : index
    %c0_23 = arith.constant 0 : index
    %c0_24 = arith.constant 0 : index
    %18 = vector.load %arg2[%c2, %c0_23, %c0_24] : memref<15x128x128xbf16, #tpu.memory_space<vmem>>, vector<1x128x128xbf16>
    %19 = vector.shape_cast %18 : vector<1x128x128xbf16> to vector<128x128xbf16>
    %cst_25 = arith.constant dense<0.000000e+00> : vector<16x128xf32>
    %20 = tpu.matmul %17, %19, %cst_25 {dimension_numbers = #tpu.dot_dimension_numbers<[1], [0], [0], [1], [0, 0, 1, 1], [], []>} : vector<16x128xbf16>, vector<128x128xbf16>, vector<16x128xf32> -> vector<16x128xf32>
    %21 = arith.addf %15, %20 : vector<16x128xf32>
    %c0_26 = arith.constant 0 : index
    %c9 = arith.constant 9 : index
    %c0_27 = arith.constant 0 : index
    %22 = vector.load %arg5[%c0_26, %c9, %c0_27] : memref<1x32x128xbf16, #tpu.memory_space<vmem>>, vector<1x16x128xbf16>
    %23 = vector.shape_cast %22 : vector<1x16x128xbf16> to vector<16x128xbf16>
    %c3 = arith.constant 3 : index
    %c0_28 = arith.constant 0 : index
    %c0_29 = arith.constant 0 : index
    %24 = vector.load %arg2[%c3, %c0_28, %c0_29] : memref<15x128x128xbf16, #tpu.memory_space<vmem>>, vector<1x128x128xbf16>
    %25 = vector.shape_cast %24 : vector<1x128x128xbf16> to vector<128x128xbf16>
    %cst_30 = arith.constant dense<0.000000e+00> : vector<16x128xf32>
    %26 = tpu.matmul %23, %25, %cst_30 {dimension_numbers = #tpu.dot_dimension_numbers<[1], [0], [0], [1], [0, 0, 1, 1], [], []>} : vector<16x128xbf16>, vector<128x128xbf16>, vector<16x128xf32> -> vector<16x128xf32>
    %27 = arith.addf %21, %26 : vector<16x128xf32>
    %c0_31 = arith.constant 0 : index
    %c10 = arith.constant 10 : index
    %c0_32 = arith.constant 0 : index
    %28 = vector.load %arg5[%c0_31, %c10, %c0_32] : memref<1x32x128xbf16, #tpu.memory_space<vmem>>, vector<1x16x128xbf16>
    %29 = vector.shape_cast %28 : vector<1x16x128xbf16> to vector<16x128xbf16>
    %c4 = arith.constant 4 : index
    %c0_33 = arith.constant 0 : index
    %c0_34 = arith.constant 0 : index
    %30 = vector.load %arg2[%c4, %c0_33, %c0_34] : memref<15x128x128xbf16, #tpu.memory_space<vmem>>, vector<1x128x128xbf16>
    %31 = vector.shape_cast %30 : vector<1x128x128xbf16> to vector<128x128xbf16>
    %cst_35 = arith.constant dense<0.000000e+00> : vector<16x128xf32>
    %32 = tpu.matmul %29, %31, %cst_35 {dimension_numbers = #tpu.dot_dimension_numbers<[1], [0], [0], [1], [0, 0, 1, 1], [], []>} : vector<16x128xbf16>, vector<128x128xbf16>, vector<16x128xf32> -> vector<16x128xf32>
    %33 = arith.addf %27, %32 : vector<16x128xf32>
    %c0_36 = arith.constant 0 : index
    %c0_37 = arith.constant 0 : index
    %c0_38 = arith.constant 0 : index
    %34 = vector.load %arg3[%c0_36, %c0_37, %c0_38] : memref<3x1x128xf32, #tpu.memory_space<vmem>>, vector<1x1x128xf32>
    %35 = vector.shape_cast %34 : vector<1x1x128xf32> to vector<1x128xf32>
    %36 = vector.broadcast %35 : vector<1x128xf32> to vector<16x128xf32>
    %37 = arith.addf %33, %36 : vector<16x128xf32>
    %cst_39 = arith.constant 2.000000e+01 : f32
    %38 = vector.broadcast %cst_39 : f32 to vector<16x128xf32>
    %39 = arith.minimumf %37, %38 : vector<16x128xf32>
    %40 = math.exp %39 : vector<16x128xf32>
    %cst_40 = arith.constant 2.000000e+00 : f32
    %41 = vector.broadcast %cst_40 : f32 to vector<16x128xf32>
    %42 = arith.addf %40, %41 : vector<16x128xf32>
    %43 = arith.mulf %40, %42 : vector<16x128xf32>
    %44 = arith.mulf %37, %43 : vector<16x128xf32>
    %cst_41 = arith.constant 2.000000e+00 : f32
    %45 = vector.broadcast %cst_41 : f32 to vector<16x128xf32>
    %46 = arith.addf %43, %45 : vector<16x128xf32>
    %47 = tpu.reciprocal %46 {approx = true} : vector<16x128xf32> -> vector<16x128xf32>
    %48 = arith.mulf %44, %47 : vector<16x128xf32>
    %49 = vector.shape_cast %48 : vector<16x128xf32> to vector<1x16x128xf32>
    %50 = arith.truncf %49 : vector<1x16x128xf32> to vector<1x16x128xbf16>
    %c0_42 = arith.constant 0 : index
    %c8_43 = arith.constant 8 : index
    %c0_44 = arith.constant 0 : index
    %51 = vector.load %arg5[%c0_42, %c8_43, %c0_44] : memref<1x32x128xbf16, #tpu.memory_space<vmem>>, vector<1x16x128xbf16>
    tpu.vector_store %arg5[%c0_42, %c8_43, %c0_44], %50 {strides = array<i32>} : memref<1x32x128xbf16, #tpu.memory_space<vmem>>, vector<1x16x128xbf16>,
    %c0_45 = arith.constant 0 : index
    %c6_46 = arith.constant 6 : index
    %c0_47 = arith.constant 0 : index
    %52 = vector.load %arg5[%c0_45, %c6_46, %c0_47] : memref<1x32x128xbf16, #tpu.memory_space<vmem>>, vector<1x16x128xbf16>
    %53 = vector.shape_cast %52 : vector<1x16x128xbf16> to vector<16x128xbf16>
    %c5 = arith.constant 5 : index
    %c0_48 = arith.constant 0 : index
    %c0_49 = arith.constant 0 : index
    %54 = vector.load %arg2[%c5, %c0_48, %c0_49] : memref<15x128x128xbf16, #tpu.memory_space<vmem>>, vector<1x128x128xbf16>
    %55 = vector.shape_cast %54 : vector<1x128x128xbf16> to vector<128x128xbf16>
    %cst_50 = arith.constant dense<0.000000e+00> : vector<16x128xf32>
    %56 = tpu.matmul %53, %55, %cst_50 {dimension_numbers = #tpu.dot_dimension_numbers<[1], [0], [0], [1], [0, 0, 1, 1], [], []>} : vector<16x128xbf16>, vector<128x128xbf16>, vector<16x128xf32> -> vector<16x128xf32>
    %c0_51 = arith.constant 0 : index
    %c7_52 = arith.constant 7 : index
    %c0_53 = arith.constant 0 : index
    %57 = vector.load %arg5[%c0_51, %c7_52, %c0_53] : memref<1x32x128xbf16, #tpu.memory_space<vmem>>, vector<1x16x128xbf16>
    %58 = vector.shape_cast %57 : vector<1x16x128xbf16> to vector<16x128xbf16>
    %c6_54 = arith.constant 6 : index
    %c0_55 = arith.constant 0 : index
    %c0_56 = arith.constant 0 : index
    %59 = vector.load %arg2[%c6_54, %c0_55, %c0_56] : memref<15x128x128xbf16, #tpu.memory_space<vmem>>, vector<1x128x128xbf16>
    %60 = vector.shape_cast %59 : vector<1x128x128xbf16> to vector<128x128xbf16>
    %cst_57 = arith.constant dense<0.000000e+00> : vector<16x128xf32>
    %61 = tpu.matmul %58, %60, %cst_57 {dimension_numbers = #tpu.dot_dimension_numbers<[1], [0], [0], [1], [0, 0, 1, 1], [], []>} : vector<16x128xbf16>, vector<128x128xbf16>, vector<16x128xf32> -> vector<16x128xf32>
    %62 = arith.addf %56, %61 : vector<16x128xf32>
    %c0_58 = arith.constant 0 : index
    %c8_59 = arith.constant 8 : index
    %c0_60 = arith.constant 0 : index
    %63 = vector.load %arg5[%c0_58, %c8_59, %c0_60] : memref<1x32x128xbf16, #tpu.memory_space<vmem>>, vector<1x16x128xbf16>
    %64 = vector.shape_cast %63 : vector<1x16x128xbf16> to vector<16x128xbf16>
    %c7_61 = arith.constant 7 : index
    %c0_62 = arith.constant 0 : index
    %c0_63 = arith.constant 0 : index
    %65 = vector.load %arg2[%c7_61, %c0_62, %c0_63] : memref<15x128x128xbf16, #tpu.memory_space<vmem>>, vector<1x128x128xbf16>
    %66 = vector.shape_cast %65 : vector<1x128x128xbf16> to vector<128x128xbf16>
    %cst_64 = arith.constant dense<0.000000e+00> : vector<16x128xf32>
    %67 = tpu.matmul %64, %66, %cst_64 {dimension_numbers = #tpu.dot_dimension_numbers<[1], [0], [0], [1], [0, 0, 1, 1], [], []>} : vector<16x128xbf16>, vector<128x128xbf16>, vector<16x128xf32> -> vector<16x128xf32>
    %68 = arith.addf %62, %67 : vector<16x128xf32>
    %c0_65 = arith.constant 0 : index
    %c9_66 = arith.constant 9 : index
    %c0_67 = arith.constant 0 : index
    %69 = vector.load %arg5[%c0_65, %c9_66, %c0_67] : memref<1x32x128xbf16, #tpu.memory_space<vmem>>, vector<1x16x128xbf16>
    %70 = vector.shape_cast %69 : vector<1x16x128xbf16> to vector<16x128xbf16>
    %c8_68 = arith.constant 8 : index
    %c0_69 = arith.constant 0 : index
    %c0_70 = arith.constant 0 : index
    %71 = vector.load %arg2[%c8_68, %c0_69, %c0_70] : memref<15x128x128xbf16, #tpu.memory_space<vmem>>, vector<1x128x128xbf16>
    %72 = vector.shape_cast %71 : vector<1x128x128xbf16> to vector<128x128xbf16>
    %cst_71 = arith.constant dense<0.000000e+00> : vector<16x128xf32>
    %73 = tpu.matmul %70, %72, %cst_71 {dimension_numbers = #tpu.dot_dimension_numbers<[1], [0], [0], [1], [0, 0, 1, 1], [], []>} : vector<16x128xbf16>, vector<128x128xbf16>, vector<16x128xf32> -> vector<16x128xf32>
    %74 = arith.addf %68, %73 : vector<16x128xf32>
    %c0_72 = arith.constant 0 : index
    %c10_73 = arith.constant 10 : index
    %c0_74 = arith.constant 0 : index
    %75 = vector.load %arg5[%c0_72, %c10_73, %c0_74] : memref<1x32x128xbf16, #tpu.memory_space<vmem>>, vector<1x16x128xbf16>
    %76 = vector.shape_cast %75 : vector<1x16x128xbf16> to vector<16x128xbf16>
    %c9_75 = arith.constant 9 : index
    %c0_76 = arith.constant 0 : index
    %c0_77 = arith.constant 0 : index
    %77 = vector.load %arg2[%c9_75, %c0_76, %c0_77] : memref<15x128x128xbf16, #tpu.memory_space<vmem>>, vector<1x128x128xbf16>
    %78 = vector.shape_cast %77 : vector<1x128x128xbf16> to vector<128x128xbf16>
    %cst_78 = arith.constant dense<0.000000e+00> : vector<16x128xf32>
    %79 = tpu.matmul %76, %78, %cst_78 {dimension_numbers = #tpu.dot_dimension_numbers<[1], [0], [0], [1], [0, 0, 1, 1], [], []>} : vector<16x128xbf16>, vector<128x128xbf16>, vector<16x128xf32> -> vector<16x128xf32>
    %80 = arith.addf %74, %79 : vector<16x128xf32>
    %c1_79 = arith.constant 1 : index
    %c0_80 = arith.constant 0 : index
    %c0_81 = arith.constant 0 : index
    %81 = vector.load %arg3[%c1_79, %c0_80, %c0_81] : memref<3x1x128xf32, #tpu.memory_space<vmem>>, vector<1x1x128xf32>
    %82 = vector.shape_cast %81 : vector<1x1x128xf32> to vector<1x128xf32>
    %83 = vector.broadcast %82 : vector<1x128xf32> to vector<16x128xf32>
    %84 = arith.addf %80, %83 : vector<16x128xf32>
    %cst_82 = arith.constant 2.000000e+01 : f32
    %85 = vector.broadcast %cst_82 : f32 to vector<16x128xf32>
    %86 = arith.minimumf %84, %85 : vector<16x128xf32>
    %87 = math.exp %86 : vector<16x128xf32>
    %cst_83 = arith.constant 2.000000e+00 : f32
    %88 = vector.broadcast %cst_83 : f32 to vector<16x128xf32>
    %89 = arith.addf %87, %88 : vector<16x128xf32>
    %90 = arith.mulf %87, %89 : vector<16x128xf32>
    %91 = arith.mulf %84, %90 : vector<16x128xf32>
    %cst_84 = arith.constant 2.000000e+00 : f32
    %92 = vector.broadcast %cst_84 : f32 to vector<16x128xf32>
    %93 = arith.addf %90, %92 : vector<16x128xf32>
    %94 = tpu.reciprocal %93 {approx = true} : vector<16x128xf32> -> vector<16x128xf32>
    %95 = arith.mulf %91, %94 : vector<16x128xf32>
    %96 = vector.shape_cast %95 : vector<16x128xf32> to vector<1x16x128xf32>
    %97 = arith.truncf %96 : vector<1x16x128xf32> to vector<1x16x128xbf16>
    %c0_85 = arith.constant 0 : index
    %c8_86 = arith.constant 8 : index
    %c0_87 = arith.constant 0 : index
    %98 = vector.load %arg5[%c0_85, %c8_86, %c0_87] : memref<1x32x128xbf16, #tpu.memory_space<vmem>>, vector<1x16x128xbf16>
    tpu.vector_store %arg5[%c0_85, %c8_86, %c0_87], %97 {strides = array<i32>} : memref<1x32x128xbf16, #tpu.memory_space<vmem>>, vector<1x16x128xbf16>,
    %c0_88 = arith.constant 0 : index
    %c6_89 = arith.constant 6 : index
    %c0_90 = arith.constant 0 : index
    %99 = vector.load %arg5[%c0_88, %c6_89, %c0_90] : memref<1x32x128xbf16, #tpu.memory_space<vmem>>, vector<1x16x128xbf16>
    %100 = vector.shape_cast %99 : vector<1x16x128xbf16> to vector<16x128xbf16>
    %c10_91 = arith.constant 10 : index
    %c0_92 = arith.constant 0 : index
    %c0_93 = arith.constant 0 : index
    %101 = vector.load %arg2[%c10_91, %c0_92, %c0_93] : memref<15x128x128xbf16, #tpu.memory_space<vmem>>, vector<1x128x128xbf16>
    %102 = vector.shape_cast %101 : vector<1x128x128xbf16> to vector<128x128xbf16>
    %cst_94 = arith.constant dense<0.000000e+00> : vector<16x128xf32>
    %103 = tpu.matmul %100, %102, %cst_94 {dimension_numbers = #tpu.dot_dimension_numbers<[1], [0], [0], [1], [0, 0, 1, 1], [], []>} : vector<16x128xbf16>, vector<128x128xbf16>, vector<16x128xf32> -> vector<16x128xf32>
    %c0_95 = arith.constant 0 : index
    %c7_96 = arith.constant 7 : index
    %c0_97 = arith.constant 0 : index
    %104 = vector.load %arg5[%c0_95, %c7_96, %c0_97] : memref<1x32x128xbf16, #tpu.memory_space<vmem>>, vector<1x16x128xbf16>
    %105 = vector.shape_cast %104 : vector<1x16x128xbf16> to vector<16x128xbf16>
    %c11 = arith.constant 11 : index
    %c0_98 = arith.constant 0 : index
    %c0_99 = arith.constant 0 : index
    %106 = vector.load %arg2[%c11, %c0_98, %c0_99] : memref<15x128x128xbf16, #tpu.memory_space<vmem>>, vector<1x128x128xbf16>
    %107 = vector.shape_cast %106 : vector<1x128x128xbf16> to vector<128x128xbf16>
    %cst_100 = arith.constant dense<0.000000e+00> : vector<16x128xf32>
    %108 = tpu.matmul %105, %107, %cst_100 {dimension_numbers = #tpu.dot_dimension_numbers<[1], [0], [0], [1], [0, 0, 1, 1], [], []>} : vector<16x128xbf16>, vector<128x128xbf16>, vector<16x128xf32> -> vector<16x128xf32>
    %109 = arith.addf %103, %108 : vector<16x128xf32>
    %c0_101 = arith.constant 0 : index
    %c8_102 = arith.constant 8 : index
    %c0_103 = arith.constant 0 : index
    %110 = vector.load %arg5[%c0_101, %c8_102, %c0_103] : memref<1x32x128xbf16, #tpu.memory_space<vmem>>, vector<1x16x128xbf16>
    %111 = vector.shape_cast %110 : vector<1x16x128xbf16> to vector<16x128xbf16>
    %c12 = arith.constant 12 : index
    %c0_104 = arith.constant 0 : index
    %c0_105 = arith.constant 0 : index
    %112 = vector.load %arg2[%c12, %c0_104, %c0_105] : memref<15x128x128xbf16, #tpu.memory_space<vmem>>, vector<1x128x128xbf16>
    %113 = vector.shape_cast %112 : vector<1x128x128xbf16> to vector<128x128xbf16>
    %cst_106 = arith.constant dense<0.000000e+00> : vector<16x128xf32>
    %114 = tpu.matmul %111, %113, %cst_106 {dimension_numbers = #tpu.dot_dimension_numbers<[1], [0], [0], [1], [0, 0, 1, 1], [], []>} : vector<16x128xbf16>, vector<128x128xbf16>, vector<16x128xf32> -> vector<16x128xf32>
    %115 = arith.addf %109, %114 : vector<16x128xf32>
    %c0_107 = arith.constant 0 : index
    %c9_108 = arith.constant 9 : index
    %c0_109 = arith.constant 0 : index
    %116 = vector.load %arg5[%c0_107, %c9_108, %c0_109] : memref<1x32x128xbf16, #tpu.memory_space<vmem>>, vector<1x16x128xbf16>
    %117 = vector.shape_cast %116 : vector<1x16x128xbf16> to vector<16x128xbf16>
    %c13 = arith.constant 13 : index
    %c0_110 = arith.constant 0 : index
    %c0_111 = arith.constant 0 : index
    %118 = vector.load %arg2[%c13, %c0_110, %c0_111] : memref<15x128x128xbf16, #tpu.memory_space<vmem>>, vector<1x128x128xbf16>
    %119 = vector.shape_cast %118 : vector<1x128x128xbf16> to vector<128x128xbf16>
    %cst_112 = arith.constant dense<0.000000e+00> : vector<16x128xf32>
    %120 = tpu.matmul %117, %119, %cst_112 {dimension_numbers = #tpu.dot_dimension_numbers<[1], [0], [0], [1], [0, 0, 1, 1], [], []>} : vector<16x128xbf16>, vector<128x128xbf16>, vector<16x128xf32> -> vector<16x128xf32>
    %121 = arith.addf %115, %120 : vector<16x128xf32>
    %c0_113 = arith.constant 0 : index
    %c10_114 = arith.constant 10 : index
    %c0_115 = arith.constant 0 : index
    %122 = vector.load %arg5[%c0_113, %c10_114, %c0_115] : memref<1x32x128xbf16, #tpu.memory_space<vmem>>, vector<1x16x128xbf16>
    %123 = vector.shape_cast %122 : vector<1x16x128xbf16> to vector<16x128xbf16>
    %c14 = arith.constant 14 : index
    %c0_116 = arith.constant 0 : index
    %c0_117 = arith.constant 0 : index
    %124 = vector.load %arg2[%c14, %c0_116, %c0_117] : memref<15x128x128xbf16, #tpu.memory_space<vmem>>, vector<1x128x128xbf16>
    %125 = vector.shape_cast %124 : vector<1x128x128xbf16> to vector<128x128xbf16>
    %cst_118 = arith.constant dense<0.000000e+00> : vector<16x128xf32>
    %126 = tpu.matmul %123, %125, %cst_118 {dimension_numbers = #tpu.dot_dimension_numbers<[1], [0], [0], [1], [0, 0, 1, 1], [], []>} : vector<16x128xbf16>, vector<128x128xbf16>, vector<16x128xf32> -> vector<16x128xf32>
    %127 = arith.addf %121, %126 : vector<16x128xf32>
    %c2_119 = arith.constant 2 : index
    %c0_120 = arith.constant 0 : index
    %c0_121 = arith.constant 0 : index
    %128 = vector.load %arg3[%c2_119, %c0_120, %c0_121] : memref<3x1x128xf32, #tpu.memory_space<vmem>>, vector<1x1x128xf32>
    %129 = vector.shape_cast %128 : vector<1x1x128xf32> to vector<1x128xf32>
    %130 = vector.broadcast %129 : vector<1x128xf32> to vector<16x128xf32>
    %131 = arith.addf %127, %130 : vector<16x128xf32>
    %cst_122 = arith.constant 2.000000e+01 : f32
    %132 = vector.broadcast %cst_122 : f32 to vector<16x128xf32>
    %133 = arith.minimumf %131, %132 : vector<16x128xf32>
    %134 = math.exp %133 : vector<16x128xf32>
    %cst_123 = arith.constant 2.000000e+00 : f32
    %135 = vector.broadcast %cst_123 : f32 to vector<16x128xf32>
    %136 = arith.addf %134, %135 : vector<16x128xf32>
    %137 = arith.mulf %134, %136 : vector<16x128xf32>
    %138 = arith.mulf %131, %137 : vector<16x128xf32>
    %cst_124 = arith.constant 2.000000e+00 : f32
    %139 = vector.broadcast %cst_124 : f32 to vector<16x128xf32>
    %140 = arith.addf %137, %139 : vector<16x128xf32>
    %141 = tpu.reciprocal %140 {approx = true} : vector<16x128xf32> -> vector<16x128xf32>
    %142 = arith.mulf %138, %141 : vector<16x128xf32>
    %143 = vector.shape_cast %142 : vector<16x128xf32> to vector<1x16x128xf32>
    %c0_125 = arith.constant 0 : index
    %c0_126 = arith.constant 0 : index
    %c0_127 = arith.constant 0 : index
    %144 = vector.load %arg4[%c0_125, %c0_126, %c0_127] : memref<1x16x128xf32, #tpu.memory_space<vmem>>, vector<1x16x128xf32>
    tpu.vector_store %arg4[%c0_125, %c0_126, %c0_127], %143 {strides = array<i32>} : memref<1x16x128xf32, #tpu.memory_space<vmem>>, vector<1x16x128xf32>,
    return
  }
  func.func @transform_0(%arg0: i32) -> (i32, i32, i32) {
    %c0_i32 = arith.constant 0 : i32
    %c0_i32_0 = arith.constant 0 : i32
    %c0_i32_1 = arith.constant 0 : i32
    return %arg0, %c0_i32, %c0_i32_0 : i32, i32, i32
  }
  func.func @transform_1(%arg0: i32) -> (i32, i32, i32) {
    %c0_i32 = arith.constant 0 : i32
    %c0_i32_0 = arith.constant 0 : i32
    %c0_i32_1 = arith.constant 0 : i32
    %c0_i32_2 = arith.constant 0 : i32
    return %c0_i32, %c0_i32_0, %c0_i32_1 : i32, i32, i32
  }
  func.func @transform_2(%arg0: i32) -> (i32, i32, i32) {
    %c0_i32 = arith.constant 0 : i32
    %c0_i32_0 = arith.constant 0 : i32
    %c0_i32_1 = arith.constant 0 : i32
    %c0_i32_2 = arith.constant 0 : i32
    return %c0_i32, %c0_i32_0, %c0_i32_1 : i32, i32, i32
  }
  func.func @transform_3(%arg0: i32) -> (i32, i32, i32) {
    %c0_i32 = arith.constant 0 : i32
    %c0_i32_0 = arith.constant 0 : i32
    %c0_i32_1 = arith.constant 0 : i32
    return %arg0, %c0_i32, %c0_i32_0 : i32, i32, i32
  }
}

</mosaic_0001>

<llo_original>
// kernel: local_temporal_extraction.1
$region0: #{local_temporal_extraction.1}
  #allocation0 [shape = 'u32[]', space=smem, size = 0x4, offset = 0x4, fixed_abs, tag = 'smem constant byte address 0x4 - core index']
  #allocation1 [shape = 'u32[144,128]{1,0:T(1,128)}', space=vmem, size = 0x12000, scoped, tag = 'internal scratch']
  #allocation2 [shape = 'bf16[1,32,128]{2,1,0:T(8,128)(2,1)}', space=vmem, size = 0x2000, scoped, tag = 'scratch operand']
  %s0 = inlined_call_operand.vmem [shape: bf16[2,16,128], index: 0, kind: input, shape index: {}]
  %s1 = inlined_call_operand.hbm [shape: bf16[15,128,128], index: 1, kind: input, shape index: {}]
  %s2 = inlined_call_operand.vmem [shape: f32[3,1,128], index: 2, kind: input, shape index: {}]
  %s3 = inlined_call_operand.vmem [shape: f32[2,16,128], index: 3, kind: output, shape index: {}]
  %s4 = sld [smem:[#allocation0]]
  $region49: #{local_temporal_extraction.1} parent=0
    _
  %s6 = ssub.s32 1, %s4
  %s7 = scalar_select 0, %s6, %s4
  $region1: #{local_temporal_extraction.1} parent=0
    #allocation3 [shape = 'u8[491520]{0}', space=vmem, size = 0x78000, scoped, tag = 'input window, operand 1, single buffered']
    #allocation4 [shape = 's32[2]{0}', space=sflag, size = 0x8, scoped, tag = 'scoped memory for local_temporal_extraction.1']
    %8 = vsyncpa [#allocation4], 0
    loop: start=0, step=1, limit=4
    $region2: #{local_temporal_extraction.1} parent=1 // loop_pre_header
      _
    $region3: #{local_temporal_extraction.1} parent=1 // loop_header
      %s10 = sphi 0, %s14
      %p11 = scmp.ge.s32.totalorder %s10, 4
      %s20 = sphi 0, %s22
      %s23 = sphi 0, %s20
      %s24 = sphi 0, %s23
      %s40 = sphi 0, %s24
      %s44 = sphi 0, %s44
      %s46 = sphi 0, %s44
      %s47 = sphi 0, %s46
      %s61 = sphi 0, %s47
      %s65 = sphi 0, %s65
      %s67 = sphi 0, %s65
      %s68 = sphi 0, %s67
      %s82 = sphi 0, %s68
      %s88 = sphi 0, %s90
      %s91 = sphi 0, %s88
      %s92 = sphi 0, %s91
      %s108 = sphi 0, %s92
    $region4: #{local_temporal_extraction.1} parent=1 // loop_header_branch
      %13 = sbr.rel (%p11) target = $region8
    $region5: #{local_temporal_extraction.1} parent=1 // loop_body
      %s15 = ssub.s32 %s10, 1
      %s16 = ssub.s32 %s10, 2
      %s17 = sadd.s32 %s10, 1
      %s18 = ssub.s32 %s10, %s17
      %p19 = scmp.eq.s32.totalorder %s18, 0
      %s21 = sadd.s32 %s20, 1
      %s22 = scalar_select %p19, %s20, %s21
      %p25 = pneg %p19
      %p26 = scmp.eq.s32.totalorder %s10, 1
      %p27 = por %p25, %p26
      %p28 = scmp.ne.s32.totalorder %s20, %s23
      %p29 = scmp.eq.s32.totalorder %s10, 0
      %p30 = por %p28, %p29
      %p31 = scmp.ne.s32.totalorder %s20, %s23
      %p32 = scmp.eq.s32.totalorder %s15, 1
      %p33 = por %p31, %p32
      %p34 = scmp.ne.s32.totalorder %s23, %s24
      %p35 = scmp.eq.s32.totalorder %s15, 0
      %p36 = por %p34, %p35
      %p37 = scmp.ne.s32.totalorder %s23, %s24
      %p38 = scmp.eq.s32.totalorder %s16, 1
      %p39 = por %p37, %p38
      %p41 = scmp.ne.s32.totalorder %s24, %s40
      %p42 = scmp.eq.s32.totalorder %s16, 0
      %p43 = por %p41, %p42
      %s45 = sadd.s32 %s44, 1
      %p48 = scmp.eq.s32.totalorder %s10, 1
      %p49 = scmp.ne.s32.totalorder %s44, %s46
      %p50 = scmp.eq.s32.totalorder %s10, 0
      %p51 = por %p49, %p50
      %p52 = scmp.ne.s32.totalorder %s44, %s46
      %p53 = scmp.eq.s32.totalorder %s15, 1
      %p54 = por %p52, %p53
      %p55 = scmp.ne.s32.totalorder %s46, %s47
      %p56 = scmp.eq.s32.totalorder %s15, 0
      %p57 = por %p55, %p56
      %p58 = scmp.ne.s32.totalorder %s46, %s47
      %p59 = scmp.eq.s32.totalorder %s16, 1
      %p60 = por %p58, %p59
      %p62 = scmp.ne.s32.totalorder %s47, %s61
      %p63 = scmp.eq.s32.totalorder %s16, 0
      %p64 = por %p62, %p63
      %s66 = sadd.s32 %s65, 1
      %p69 = scmp.eq.s32.totalorder %s10, 1
      %p70 = scmp.ne.s32.totalorder %s65, %s67
      %p71 = scmp.eq.s32.totalorder %s10, 0
      %p72 = por %p70, %p71
      %p73 = scmp.ne.s32.totalorder %s65, %s67
      %p74 = scmp.eq.s32.totalorder %s15, 1
      %p75 = por %p73, %p74
      %p76 = scmp.ne.s32.totalorder %s67, %s68
      %p77 = scmp.eq.s32.totalorder %s15, 0
      %p78 = por %p76, %p77
      %p79 = scmp.ne.s32.totalorder %s67, %s68
      %p80 = scmp.eq.s32.totalorder %s16, 1
      %p81 = por %p79, %p80
      %p83 = scmp.ne.s32.totalorder %s68, %s82
      %p84 = scmp.eq.s32.totalorder %s16, 0
      %p85 = por %p83, %p84
      %s86 = ssub.s32 %s10, %s17
      %p87 = scmp.eq.s32.totalorder %s86, 0
      %s89 = sadd.s32 %s88, 1
      %s90 = scalar_select %p87, %s88, %s89
      %p93 = pneg %p87
      %p94 = scmp.eq.s32.totalorder %s10, 1
      %p95 = por %p93, %p94
      %p96 = scmp.ne.s32.totalorder %s88, %s91
      %p97 = scmp.eq.s32.totalorder %s10, 0
      %p98 = por %p96, %p97
      %p99 = scmp.ne.s32.totalorder %s88, %s91
      %p100 = scmp.eq.s32.totalorder %s15, 1
      %p101 = por %p99, %p100
      %p102 = scmp.ne.s32.totalorder %s91, %s92
      %p103 = scmp.eq.s32.totalorder %s15, 0
      %p104 = por %p102, %p103
      %p105 = scmp.ne.s32.totalorder %s91, %s92
      %p106 = scmp.eq.s32.totalorder %s16, 1
      %p107 = por %p105, %p106
      %p109 = scmp.ne.s32.totalorder %s92, %s108
      %p110 = scmp.eq.s32.totalorder %s16, 0
      %p111 = por %p109, %p110
      %p112 = scmp.le.s32.totalorder 1, %s10
      %p113 = scmp.lt.s32.totalorder %s10, 3
      %p114 = pnand %p112, %p113
      %p115 = pneg %p114
      // Predicated region
      $region9: #{local_temporal_extraction.1} parent=5 // pred_check
        _
      $region10: #{local_temporal_extraction.1} parent=5 // pred_check_branch
        %117 = sbr.rel (%p114) target = $region12
      $region11: #{local_temporal_extraction.1} parent=5 // pred_region
        %s118 = ssub.s32 %s10, 1
        // Predicated region
        $region13: #{local_temporal_extraction.1} parent=11 // pred_check
          %p119 = pneg %p57
        $region14: #{local_temporal_extraction.1} parent=11 // pred_check_branch
          %121 = sbr.rel (%p119) target = $region16
        $region15: #{local_temporal_extraction.1} parent=11 // pred_region
          %s123 = ssub.s32 15360, 15360
          %124 = vsyncadd [#allocation4], %s123
          %s125 = sshll.u32 [#allocation3], 4
          %s126 = int_to_ptr.vmem [resolvable:$true] %s125
          %131 = dma.hbm_to_vmem [thread:$0]  %s1, 15360, %s126, [#allocation4], 64, 64, 4
        $region16: #{local_temporal_extraction.1} parent=11 // pred_fallthru
          _
        // Predicated region
        $region17: #{local_temporal_extraction.1} parent=11 // pred_check
          %p132 = pneg %p78
        $region18: #{local_temporal_extraction.1} parent=11 // pred_check_branch
          %134 = sbr.rel (%p132) target = $region20
        $region19: #{local_temporal_extraction.1} parent=11 // pred_region
          _
        $region20: #{local_temporal_extraction.1} parent=11 // pred_fallthru
          _
      $region12: #{local_temporal_extraction.1} parent=5 // pred_fallthru
        _
      %p135 = scmp.lt.s32.totalorder %s10, 2
      // Predicated region
      $region21: #{local_temporal_extraction.1} parent=5 // pred_check
        %p136 = pneg %p135
      $region22: #{local_temporal_extraction.1} parent=5 // pred_check_branch
        %138 = sbr.rel (%p136) target = $region24
      $region23: #{local_temporal_extraction.1} parent=5 // pred_region
        // Predicated region
        $region25: #{local_temporal_extraction.1} parent=23 // pred_check
          %p139 = pneg %p30
        $region26: #{local_temporal_extraction.1} parent=23 // pred_check_branch
          %141 = sbr.rel (%p139) target = $region28
        $region27: #{local_temporal_extraction.1} parent=23 // pred_region
          %p142 = scmp.lt.s32.totalorder %s10, 1
          %s143 = scalar_select %p142, %s10, 1
          %s144 = smul.addr %s143, 2
          %s145 = smul.addr %s144, 4
          %s146 = scalar_lea.vmem %s0, %s145
        $region28: #{local_temporal_extraction.1} parent=23 // pred_fallthru
          _
      $region24: #{local_temporal_extraction.1} parent=5 // pred_fallthru
        _
      %p147 = scmp.le.s32.totalorder 1, %s10
      %p148 = scmp.lt.s32.totalorder %s10, 3
      %p149 = pnand %p147, %p148
      %p150 = pneg %p149
      // Predicated region
      $region29: #{local_temporal_extraction.1} parent=5 // pred_check
        _
      $region30: #{local_temporal_extraction.1} parent=5 // pred_check_branch
        %152 = sbr.rel (%p149) target = $region32
      $region31: #{local_temporal_extraction.1} parent=5 // pred_region
        %s153 = ssub.s32 %s10, 1
        // Predicated region
        $region33: #{local_temporal_extraction.1} parent=31 // pred_check
          %p154 = pneg %p57
        $region34: #{local_temporal_extraction.1} parent=31 // pred_check_branch
          %156 = sbr.rel (%p154) target = $region36
        $region35: #{local_temporal_extraction.1} parent=31 // pred_region
          %157 = dma.done [#allocation4], 15360
        $region36: #{local_temporal_extraction.1} parent=31 // pred_fallthru
          _
        %p158 = scmp.lt.s32.totalorder %s15, 1
        %s159 = scalar_select %p158, %s15, 1
        %s160 = smul.addr %s159, 2
        %s161 = smul.addr %s160, 4
        %s162 = scalar_lea.vmem %s0, %s161
        %p163 = pneg %p36
        %p164 = pneg %p33
        %p165 = pneg %p57
        %p166 = pneg %p54
        %p167 = pneg %p78
        %p168 = pneg %p75
        %p169 = pneg %p104
        %p170 = pneg %p101
        %p171 = scmp.lt.s32.totalorder %s15, 1
        %s172 = scalar_select %p171, %s15, 1
        %s173 = smul.addr %s172, 2
        %s174 = smul.addr %s173, 8
        %s175 = scalar_lea.vmem %s3, %s174
        %p176 = scmp.lt.s32.totalorder %s15, 1
        %s177 = scalar_select %p176, %s15, 1
        %s178 = smul.addr %s177, 2
        %s179 = smul.addr %s178, 4
        %s180 = scalar_lea.vmem %s0, %s179
        %p181 = scmp.lt.s32.totalorder %s15, 1
        %s182 = scalar_select %p181, %s15, 1
        %s183 = smul.addr %s182, 2
        %s184 = smul.addr %s183, 8
        %s185 = scalar_lea.vmem %s3, %s184
        %187 = vst [vmem:[#allocation2] sm:$0xf] 0
        %188 = vst [vmem:[#allocation2 + $0xc] sm:$0xf] 0
        %v189 = vld [vmem:[%s180] sm:$0xf]
        %v190 = vld [vmem:[%s180 + $0x4] sm:$0xf]
        %191 = vst [vmem:[#allocation2 + $0x4] sm:$0xf] %v189
        %192 = vst [vmem:[#allocation2 + $0x8] sm:$0xf] %v190
        %v193 = vld [vmem:[#allocation2] sm:$0x8]
        %v194 = vld [vmem:[#allocation2 + $0x4] sm:$0xf]
        %v195 = vld [vmem:[#allocation2 + $0x8] sm:$0x7]
        %v196 = vld [vmem:[#allocation3] sm:$0xf]
        %v197 = vld [vmem:[#allocation3 + $0x4] sm:$0xf]
        %v198 = vld [vmem:[#allocation3 + $0x8] sm:$0xf]
        %v199 = vld [vmem:[#allocation3 + $0xc] sm:$0xf]
        %v200 = vld [vmem:[#allocation3 + $0x10] sm:$0xf]
        %v201 = vld [vmem:[#allocation3 + $0x14] sm:$0xf]
        %v202 = vld [vmem:[#allocation3 + $0x18] sm:$0xf]
        %v203 = vld [vmem:[#allocation3 + $0x1c] sm:$0xf]
        %v204 = vld [vmem:[#allocation3 + $0x20] sm:$0xf]
        %v205 = vld [vmem:[#allocation3 + $0x24] sm:$0xf]
        %v206 = vld [vmem:[#allocation3 + $0x28] sm:$0xf]
        %v207 = vld [vmem:[#allocation3 + $0x2c] sm:$0xf]
        %v208 = vld [vmem:[#allocation3 + $0x30] sm:$0xf]
        %v209 = vld [vmem:[#allocation3 + $0x34] sm:$0xf]
        %v210 = vld [vmem:[#allocation3 + $0x38] sm:$0xf]
        %v211 = vld [vmem:[#allocation3 + $0x3c] sm:$0xf]
        %v212 = vld [vmem:[#allocation2 + $0x8] sm:$0xf]
        %s213 = scalar_lea.vmem [#allocation3], 64
        %v214 = vld [vmem:[%s213] sm:$0xf]
        %v215 = vld [vmem:[%s213 + $0x4] sm:$0xf]
        %v216 = vld [vmem:[%s213 + $0x8] sm:$0xf]
        %v217 = vld [vmem:[%s213 + $0xc] sm:$0xf]
        %v218 = vld [vmem:[%s213 + $0x10] sm:$0xf]
        %v219 = vld [vmem:[%s213 + $0x14] sm:$0xf]
        %v220 = vld [vmem:[%s213 + $0x18] sm:$0xf]
        %v221 = vld [vmem:[%s213 + $0x1c] sm:$0xf]
        %v222 = vld [vmem:[%s213 + $0x20] sm:$0xf]
        %v223 = vld [vmem:[%s213 + $0x24] sm:$0xf]
        %v224 = vld [vmem:[%s213 + $0x28] sm:$0xf]
        %v225 = vld [vmem:[%s213 + $0x2c] sm:$0xf]
        %v226 = vld [vmem:[%s213 + $0x30] sm:$0xf]
        %v227 = vld [vmem:[%s213 + $0x34] sm:$0xf]
        %v228 = vld [vmem:[%s213 + $0x38] sm:$0xf]
        %v229 = vld [vmem:[%s213 + $0x3c] sm:$0xf]
        %v233 = vunpack.c.l.b16 %v193
        %v234 = vunpack.c.l.b16 %v194
        %v235 = vunpack.c.l.b16 %v212
        %v236 = vpack.c.b16 %v234, %v233
        %v237 = vpack.c.b16 %v235, %v235
        %vm238 = vsmask.f32 4352
        %v240 = vshrl.u32 %v236, 16
        %v242 = vrot.slane %v240, 3
        %v243 = vshll.u32 %v236, 16
        %v245 = vrot.slane %v243, 4
        %v246 = vor.u32 %v242, %v245
        %v248 = vshrl.u32 %v237, 16
        %v250 = vrot.slane %v248, 3
        %v251 = vshll.u32 %v237, 16
        %v253 = vrot.slane %v251, 4
        %v254 = vor.u32 %v250, %v253
        %v255 = vsel %vm238, %v246, %v254
        %v273 = vunpack.c.l.b16 %v214
        %v274 = vunpack.c.l.b16 %v215
        %v275 = vunpack.c.l.b16 %v216
        %v276 = vunpack.c.l.b16 %v217
        %v277 = vunpack.c.l.b16 %v218
        %v278 = vunpack.c.l.b16 %v219
        %v279 = vunpack.c.l.b16 %v220
        %v280 = vunpack.c.l.b16 %v221
        %v281 = vunpack.c.l.b16 %v222
        %v282 = vunpack.c.l.b16 %v223
        %v283 = vunpack.c.l.b16 %v224
        %v284 = vunpack.c.l.b16 %v225
        %v285 = vunpack.c.l.b16 %v226
        %v286 = vunpack.c.l.b16 %v227
        %v287 = vunpack.c.l.b16 %v228
        %v288 = vunpack.c.l.b16 %v229
        %v289 = vpack.c.b16 %v274, %v273
        %v290 = vpack.c.b16 %v276, %v275
        %v291 = vpack.c.b16 %v278, %v277
        %v292 = vpack.c.b16 %v280, %v279
        %v293 = vpack.c.b16 %v282, %v281
        %v294 = vpack.c.b16 %v284, %v283
        %v295 = vpack.c.b16 %v286, %v285
        %v296 = vpack.c.b16 %v288, %v287
        %305 = vmatprep.subr.bf16.mxu0 0
        %306 = vmatpush1.bf16.msra.mxu0 %v296
        %307 = vmatprep.subr.bf16.mxu0 0
        %308 = vmatpush1.bf16.msra.mxu0 %v295
        %309 = vmatprep.subr.bf16.mxu0 0
        %310 = vmatpush1.bf16.msra.mxu0 %v294
        %311 = vmatprep.subr.bf16.mxu0 0
        %312 = vmatpush1.bf16.msra.mxu0 %v293
        %313 = vmatprep.subr.bf16.mxu0 0
        %314 = vmatpush1.bf16.msra.mxu0 %v292
        %315 = vmatprep.subr.bf16.mxu0 0
        %316 = vmatpush1.bf16.msra.mxu0 %v291
        %317 = vmatprep.subr.bf16.mxu0 0
        %318 = vmatpush1.bf16.msra.mxu0 %v290
        %319 = vmatprep.subr.bf16.mxu0 0
        %320 = vmatpush1.bf16.msra.mxu0 %v289
        %321 = vmatprep.subr.bf16.mxu0 0
        %322 = vmatpush2.bf16.msra.mxu0 0
        %323 = vmatprep.subr.bf16.mxu0 0
        %324 = vmatpush2.bf16.msra.mxu0 0
        %325 = vmatprep.subr.bf16.mxu0 0
        %326 = vmatpush2.bf16.msra.mxu0 0
        %327 = vmatprep.subr.bf16.mxu0 0
        %328 = vmatpush2.bf16.msra.mxu0 0
        %329 = vmatprep.subr.bf16.mxu0 0
        %330 = vmatpush2.bf16.msra.mxu0 0
        %331 = vmatprep.subr.bf16.mxu0 0
        %332 = vmatpush2.bf16.msra.mxu0 0
        %333 = vmatprep.subr.bf16.mxu0 0
        %334 = vmatpush2.bf16.msra.mxu0 0
        %335 = vmatprep.subr.bf16.mxu0 0
        %336 = vmatpush2.bf16.msra.mxu0 0
        %337 = vmatprep.mubr.bf16.mxu0 0
        %338 = vmatmul.mubr.bf16.gmra.mxu0 %v255
        %v339 = vpop.f32.mrf.mxu0
        %v340 = vadd.f32 0.0, %v339
        %v341 = vpop.f32.mrf.mxu0
        %v342 = vpop.f32.mrf.mxu0
        %v343 = vadd.f32 0.0, %v342
        %v344 = vpop.f32.mrf.mxu0
        %345 = vdwg.mxu0
        %v347 = vunpack.c.l.b16 %v195
        %v348 = vpack.c.b16 %v347, %v347
        %vm349 = vcmask 1044480
        %v350 = vrot.slane %v236, 3
        %v351 = vrot.slane %v348, 3
        %v352 = vsel %vm349, %v350, %v351
        %v370 = vunpack.c.l.b16 %v196
        %v371 = vunpack.c.l.b16 %v197
        %v372 = vunpack.c.l.b16 %v198
        %v373 = vunpack.c.l.b16 %v199
        %v374 = vunpack.c.l.b16 %v200
        %v375 = vunpack.c.l.b16 %v201
        %v376 = vunpack.c.l.b16 %v202
        %v377 = vunpack.c.l.b16 %v203
        %v378 = vunpack.c.l.b16 %v204
        %v379 = vunpack.c.l.b16 %v205
        %v380 = vunpack.c.l.b16 %v206
        %v381 = vunpack.c.l.b16 %v207
        %v382 = vunpack.c.l.b16 %v208
        %v383 = vunpack.c.l.b16 %v209
        %v384 = vunpack.c.l.b16 %v210
        %v385 = vunpack.c.l.b16 %v211
        %v386 = vpack.c.b16 %v371, %v370
        %v387 = vpack.c.b16 %v373, %v372
        %v388 = vpack.c.b16 %v375, %v374
        %v389 = vpack.c.b16 %v377, %v376
        %v390 = vpack.c.b16 %v379, %v378
        %v391 = vpack.c.b16 %v381, %v380
        %v392 = vpack.c.b16 %v383, %v382
        %v393 = vpack.c.b16 %v385, %v384
        %402 = vmatprep.subr.bf16.mxu0 0
        %403 = vmatpush1.bf16.msra.mxu0 %v393
        %404 = vmatprep.subr.bf16.mxu0 0
        %405 = vmatpush1.bf16.msra.mxu0 %v392
        %406 = vmatprep.subr.bf16.mxu0 0
        %407 = vmatpush1.bf16.msra.mxu0 %v391
        %408 = vmatprep.subr.bf16.mxu0 0
        %409 = vmatpush1.bf16.msra.mxu0 %v390
        %410 = vmatprep.subr.bf16.mxu0 0
        %411 = vmatpush1.bf16.msra.mxu0 %v389
        %412 = vmatprep.subr.bf16.mxu0 0
        %413 = vmatpush1.bf16.msra.mxu0 %v388
        %414 = vmatprep.subr.bf16.mxu0 0
        %415 = vmatpush1.bf16.msra.mxu0 %v387
        %416 = vmatprep.subr.bf16.mxu0 0
        %417 = vmatpush1.bf16.msra.mxu0 %v386
        %418 = vmatprep.subr.bf16.mxu0 0
        %419 = vmatpush2.bf16.msra.mxu0 0
        %420 = vmatprep.subr.bf16.mxu0 0
        %421 = vmatpush2.bf16.msra.mxu0 0
        %422 = vmatprep.subr.bf16.mxu0 0
        %423 = vmatpush2.bf16.msra.mxu0 0
        %424 = vmatprep.subr.bf16.mxu0 0
        %425 = vmatpush2.bf16.msra.mxu0 0
        %426 = vmatprep.subr.bf16.mxu0 0
        %427 = vmatpush2.bf16.msra.mxu0 0
        %428 = vmatprep.subr.bf16.mxu0 0
        %429 = vmatpush2.bf16.msra.mxu0 0
        %430 = vmatprep.subr.bf16.mxu0 0
        %431 = vmatpush2.bf16.msra.mxu0 0
        %432 = vmatprep.subr.bf16.mxu0 0
        %433 = vmatpush2.bf16.msra.mxu0 0
        %434 = vmatprep.mubr.bf16.mxu0 0
        %435 = vmatmul.mubr.bf16.gmra.mxu0 %v352
        %v436 = vpop.f32.mrf.mxu0
        %v437 = vadd.f32 %v340, %v436
        %v438 = vpop.f32.mrf.mxu0
        %v439 = vpop.f32.mrf.mxu0
        %v440 = vadd.f32 %v343, %v439
        %v441 = vpop.f32.mrf.mxu0
        %442 = vdwg.mxu0
        %s443 = scalar_lea.vmem [#allocation3], 128
        %v444 = vld [vmem:[%s443] sm:$0xf]
        %v445 = vld [vmem:[%s443 + $0x4] sm:$0xf]
        %v446 = vld [vmem:[%s443 + $0x8] sm:$0xf]
        %v447 = vld [vmem:[%s443 + $0xc] sm:$0xf]
        %v448 = vld [vmem:[%s443 + $0x10] sm:$0xf]
        %v449 = vld [vmem:[%s443 + $0x14] sm:$0xf]
        %v450 = vld [vmem:[%s443 + $0x18] sm:$0xf]
        %v451 = vld [vmem:[%s443 + $0x1c] sm:$0xf]
        %v452 = vld [vmem:[%s443 + $0x20] sm:$0xf]
        %v453 = vld [vmem:[%s443 + $0x24] sm:$0xf]
        %v454 = vld [vmem:[%s443 + $0x28] sm:$0xf]
        %v455 = vld [vmem:[%s443 + $0x2c] sm:$0xf]
        %v456 = vld [vmem:[%s443 + $0x30] sm:$0xf]
        %v457 = vld [vmem:[%s443 + $0x34] sm:$0xf]
        %v458 = vld [vmem:[%s443 + $0x38] sm:$0xf]
        %v459 = vld [vmem:[%s443 + $0x3c] sm:$0xf]
        %v460 = vpack.c.b16 %v235, %v234
        %v478 = vunpack.c.l.b16 %v444
        %v479 = vunpack.c.l.b16 %v445
        %v480 = vunpack.c.l.b16 %v446
        %v481 = vunpack.c.l.b16 %v447
        %v482 = vunpack.c.l.b16 %v448
        %v483 = vunpack.c.l.b16 %v449
        %v484 = vunpack.c.l.b16 %v450
        %v485 = vunpack.c.l.b16 %v451
        %v486 = vunpack.c.l.b16 %v452
        %v487 = vunpack.c.l.b16 %v453
        %v488 = vunpack.c.l.b16 %v454
        %v489 = vunpack.c.l.b16 %v455
        %v490 = vunpack.c.l.b16 %v456
        %v491 = vunpack.c.l.b16 %v457
        %v492 = vunpack.c.l.b16 %v458
        %v493 = vunpack.c.l.b16 %v459
        %v494 = vpack.c.b16 %v479, %v478
        %v495 = vpack.c.b16 %v481, %v480
        %v496 = vpack.c.b16 %v483, %v482
        %v497 = vpack.c.b16 %v485, %v484
        %v498 = vpack.c.b16 %v487, %v486
        %v499 = vpack.c.b16 %v489, %v488
        %v500 = vpack.c.b16 %v491, %v490
        %v501 = vpack.c.b16 %v493, %v492
        %510 = vmatprep.subr.bf16.mxu0 0
        %511 = vmatpush1.bf16.msra.mxu0 %v501
        %512 = vmatprep.subr.bf16.mxu0 0
        %513 = vmatpush1.bf16.msra.mxu0 %v500
        %514 = vmatprep.subr.bf16.mxu0 0
        %515 = vmatpush1.bf16.msra.mxu0 %v499
        %516 = vmatprep.subr.bf16.mxu0 0
        %517 = vmatpush1.bf16.msra.mxu0 %v498
        %518 = vmatprep.subr.bf16.mxu0 0
        %519 = vmatpush1.bf16.msra.mxu0 %v497
        %520 = vmatprep.subr.bf16.mxu0 0
        %521 = vmatpush1.bf16.msra.mxu0 %v496
        %522 = vmatprep.subr.bf16.mxu0 0
        %523 = vmatpush1.bf16.msra.mxu0 %v495
        %524 = vmatprep.subr.bf16.mxu0 0
        %525 = vmatpush1.bf16.msra.mxu0 %v494
        %526 = vmatprep.subr.bf16.mxu0 0
        %527 = vmatpush2.bf16.msra.mxu0 0
        %528 = vmatprep.subr.bf16.mxu0 0
        %529 = vmatpush2.bf16.msra.mxu0 0
        %530 = vmatprep.subr.bf16.mxu0 0
        %531 = vmatpush2.bf16.msra.mxu0 0
        %532 = vmatprep.subr.bf16.mxu0 0
        %533 = vmatpush2.bf16.msra.mxu0 0
        %534 = vmatprep.subr.bf16.mxu0 0
        %535 = vmatpush2.bf16.msra.mxu0 0
        %536 = vmatprep.subr.bf16.mxu0 0
        %537 = vmatpush2.bf16.msra.mxu0 0
        %538 = vmatprep.subr.bf16.mxu0 0
        %539 = vmatpush2.bf16.msra.mxu0 0
        %540 = vmatprep.subr.bf16.mxu0 0
        %541 = vmatpush2.bf16.msra.mxu0 0
        %542 = vmatprep.mubr.bf16.mxu0 0
        %543 = vmatmul.mubr.bf16.gmra.mxu0 %v460
        %v544 = vpop.f32.mrf.mxu0
        %v545 = vadd.f32 0.0, %v544
        %v546 = vpop.f32.mrf.mxu0
        %v547 = vpop.f32.mrf.mxu0
        %v548 = vadd.f32 0.0, %v547
        %v549 = vpop.f32.mrf.mxu0
        %550 = vdwg.mxu0
        %v551 = vadd.f32 %v437, %v545
        %v552 = vadd.f32 %v440, %v548
        %v553 = vld [vmem:[#allocation2 + $0x4] sm:$0xf]
        %v554 = vld [vmem:[#allocation2 + $0x8] sm:$0xf]
        %v555 = vld [vmem:[#allocation2 + $0xc] sm:$0x1]
        %s556 = scalar_lea.vmem [#allocation3], 192
        %v557 = vld [vmem:[%s556] sm:$0xf]
        %v558 = vld [vmem:[%s556 + $0x4] sm:$0xf]
        %v559 = vld [vmem:[%s556 + $0x8] sm:$0xf]
        %v560 = vld [vmem:[%s556 + $0xc] sm:$0xf]
        %v561 = vld [vmem:[%s556 + $0x10] sm:$0xf]
        %v562 = vld [vmem:[%s556 + $0x14] sm:$0xf]
        %v563 = vld [vmem:[%s556 + $0x18] sm:$0xf]
        %v564 = vld [vmem:[%s556 + $0x1c] sm:$0xf]
        %v565 = vld [vmem:[%s556 + $0x20] sm:$0xf]
        %v566 = vld [vmem:[%s556 + $0x24] sm:$0xf]
        %v567 = vld [vmem:[%s556 + $0x28] sm:$0xf]
        %v568 = vld [vmem:[%s556 + $0x2c] sm:$0xf]
        %v569 = vld [vmem:[%s556 + $0x30] sm:$0xf]
        %v570 = vld [vmem:[%s556 + $0x34] sm:$0xf]
        %v571 = vld [vmem:[%s556 + $0x38] sm:$0xf]
        %v572 = vld [vmem:[%s556 + $0x3c] sm:$0xf]
        %v576 = vunpack.c.l.b16 %v553
        %v577 = vunpack.c.l.b16 %v554
        %v578 = vunpack.c.l.b16 %v555
        %v579 = vpack.c.b16 %v577, %v576
        %v580 = vpack.c.b16 %v578, %v578
        %vm581 = vsmask.f32 7424
        %v583 = vshrl.u32 %v579, 16
        %v585 = vshll.u32 %v579, 16
        %v587 = vrot.slane %v585, 1
        %v588 = vor.u32 %v583, %v587
        %v590 = vshll.u32 %v580, 16
        %v592 = vrot.slane %v590, 1
        %v593 = vsel %vm581, %v588, %v592
        %v611 = vunpack.c.l.b16 %v557
        %v612 = vunpack.c.l.b16 %v558
        %v613 = vunpack.c.l.b16 %v559
        %v614 = vunpack.c.l.b16 %v560
        %v615 = vunpack.c.l.b16 %v561
        %v616 = vunpack.c.l.b16 %v562
        %v617 = vunpack.c.l.b16 %v563
        %v618 = vunpack.c.l.b16 %v564
        %v619 = vunpack.c.l.b16 %v565
        %v620 = vunpack.c.l.b16 %v566
        %v621 = vunpack.c.l.b16 %v567
        %v622 = vunpack.c.l.b16 %v568
        %v623 = vunpack.c.l.b16 %v569
        %v624 = vunpack.c.l.b16 %v570
        %v625 = vunpack.c.l.b16 %v571
        %v626 = vunpack.c.l.b16 %v572
        %v627 = vpack.c.b16 %v612, %v611
        %v628 = vpack.c.b16 %v614, %v613
        %v629 = vpack.c.b16 %v616, %v615
        %v630 = vpack.c.b16 %v618, %v617
        %v631 = vpack.c.b16 %v620, %v619
        %v632 = vpack.c.b16 %v622, %v621
        %v633 = vpack.c.b16 %v624, %v623
        %v634 = vpack.c.b16 %v626, %v625
        %643 = vmatprep.subr.bf16.mxu0 0
        %644 = vmatpush1.bf16.msra.mxu0 %v634
        %645 = vmatprep.subr.bf16.mxu0 0
        %646 = vmatpush1.bf16.msra.mxu0 %v633
        %647 = vmatprep.subr.bf16.mxu0 0
        %648 = vmatpush1.bf16.msra.mxu0 %v632
        %649 = vmatprep.subr.bf16.mxu0 0
        %650 = vmatpush1.bf16.msra.mxu0 %v631
        %651 = vmatprep.subr.bf16.mxu0 0
        %652 = vmatpush1.bf16.msra.mxu0 %v630
        %653 = vmatprep.subr.bf16.mxu0 0
        %654 = vmatpush1.bf16.msra.mxu0 %v629
        %655 = vmatprep.subr.bf16.mxu0 0
        %656 = vmatpush1.bf16.msra.mxu0 %v628
        %657 = vmatprep.subr.bf16.mxu0 0
        %658 = vmatpush1.bf16.msra.mxu0 %v627
        %659 = vmatprep.subr.bf16.mxu0 0
        %660 = vmatpush2.bf16.msra.mxu0 0
        %661 = vmatprep.subr.bf16.mxu0 0
        %662 = vmatpush2.bf16.msra.mxu0 0
        %663 = vmatprep.subr.bf16.mxu0 0
        %664 = vmatpush2.bf16.msra.mxu0 0
        %665 = vmatprep.subr.bf16.mxu0 0
        %666 = vmatpush2.bf16.msra.mxu0 0
        %667 = vmatprep.subr.bf16.mxu0 0
        %668 = vmatpush2.bf16.msra.mxu0 0
        %669 = vmatprep.subr.bf16.mxu0 0
        %670 = vmatpush2.bf16.msra.mxu0 0
        %671 = vmatprep.subr.bf16.mxu0 0
        %672 = vmatpush2.bf16.msra.mxu0 0
        %673 = vmatprep.subr.bf16.mxu0 0
        %674 = vmatpush2.bf16.msra.mxu0 0
        %675 = vmatprep.mubr.bf16.mxu0 0
        %676 = vmatmul.mubr.bf16.gmra.mxu0 %v593
        %v677 = vpop.f32.mrf.mxu0
        %v678 = vadd.f32 0.0, %v677
        %v679 = vpop.f32.mrf.mxu0
        %v680 = vpop.f32.mrf.mxu0
        %v681 = vadd.f32 0.0, %v680
        %v682 = vpop.f32.mrf.mxu0
        %683 = vdwg.mxu0
        %v684 = vadd.f32 %v551, %v678
        %v685 = vadd.f32 %v552, %v681
        %v686 = vld [vmem:[#allocation2 + $0x4] sm:$0xe]
        %s687 = scalar_lea.vmem [#allocation3], 256
        %v688 = vld [vmem:[%s687] sm:$0xf]
        %v689 = vld [vmem:[%s687 + $0x4] sm:$0xf]
        %v690 = vld [vmem:[%s687 + $0x8] sm:$0xf]
        %v691 = vld [vmem:[%s687 + $0xc] sm:$0xf]
        %v692 = vld [vmem:[%s687 + $0x10] sm:$0xf]
        %v693 = vld [vmem:[%s687 + $0x14] sm:$0xf]
        %v694 = vld [vmem:[%s687 + $0x18] sm:$0xf]
        %v695 = vld [vmem:[%s687 + $0x1c] sm:$0xf]
        %v696 = vld [vmem:[%s687 + $0x20] sm:$0xf]
        %v697 = vld [vmem:[%s687 + $0x24] sm:$0xf]
        %v698 = vld [vmem:[%s687 + $0x28] sm:$0xf]
        %v699 = vld [vmem:[%s687 + $0x2c] sm:$0xf]
        %v700 = vld [vmem:[%s687 + $0x30] sm:$0xf]
        %v701 = vld [vmem:[%s687 + $0x34] sm:$0xf]
        %v702 = vld [vmem:[%s687 + $0x38] sm:$0xf]
        %v703 = vld [vmem:[%s687 + $0x3c] sm:$0xf]
        %v705 = vunpack.c.l.b16 %v686
        %v706 = vpack.c.b16 %v577, %v705
        %vm707 = vcmask 1046528
        %v708 = vrot.slane %v706, 1
        %v709 = vrot.slane %v580, 1
        %v710 = vsel %vm707, %v708, %v709
        %v728 = vunpack.c.l.b16 %v688
        %v729 = vunpack.c.l.b16 %v689
        %v730 = vunpack.c.l.b16 %v690
        %v731 = vunpack.c.l.b16 %v691
        %v732 = vunpack.c.l.b16 %v692
        %v733 = vunpack.c.l.b16 %v693
        %v734 = vunpack.c.l.b16 %v694
        %v735 = vunpack.c.l.b16 %v695
        %v736 = vunpack.c.l.b16 %v696
        %v737 = vunpack.c.l.b16 %v697
        %v738 = vunpack.c.l.b16 %v698
        %v739 = vunpack.c.l.b16 %v699
        %v740 = vunpack.c.l.b16 %v700
        %v741 = vunpack.c.l.b16 %v701
        %v742 = vunpack.c.l.b16 %v702
        %v743 = vunpack.c.l.b16 %v703
        %v744 = vpack.c.b16 %v729, %v728
        %v745 = vpack.c.b16 %v731, %v730
        %v746 = vpack.c.b16 %v733, %v732
        %v747 = vpack.c.b16 %v735, %v734
        %v748 = vpack.c.b16 %v737, %v736
        %v749 = vpack.c.b16 %v739, %v738
        %v750 = vpack.c.b16 %v741, %v740
        %v751 = vpack.c.b16 %v743, %v742
        %760 = vmatprep.subr.bf16.mxu0 0
        %761 = vmatpush1.bf16.msra.mxu0 %v751
        %762 = vmatprep.subr.bf16.mxu0 0
        %763 = vmatpush1.bf16.msra.mxu0 %v750
        %764 = vmatprep.subr.bf16.mxu0 0
        %765 = vmatpush1.bf16.msra.mxu0 %v749
        %766 = vmatprep.subr.bf16.mxu0 0
        %767 = vmatpush1.bf16.msra.mxu0 %v748
        %768 = vmatprep.subr.bf16.mxu0 0
        %769 = vmatpush1.bf16.msra.mxu0 %v747
        %770 = vmatprep.subr.bf16.mxu0 0
        %771 = vmatpush1.bf16.msra.mxu0 %v746
        %772 = vmatprep.subr.bf16.mxu0 0
        %773 = vmatpush1.bf16.msra.mxu0 %v745
        %774 = vmatprep.subr.bf16.mxu0 0
        %775 = vmatpush1.bf16.msra.mxu0 %v744
        %776 = vmatprep.subr.bf16.mxu0 0
        %777 = vmatpush2.bf16.msra.mxu0 0
        %778 = vmatprep.subr.bf16.mxu0 0
        %779 = vmatpush2.bf16.msra.mxu0 0
        %780 = vmatprep.subr.bf16.mxu0 0
        %781 = vmatpush2.bf16.msra.mxu0 0
        %782 = vmatprep.subr.bf16.mxu0 0
        %783 = vmatpush2.bf16.msra.mxu0 0
        %784 = vmatprep.subr.bf16.mxu0 0
        %785 = vmatpush2.bf16.msra.mxu0 0
        %786 = vmatprep.subr.bf16.mxu0 0
        %787 = vmatpush2.bf16.msra.mxu0 0
        %788 = vmatprep.subr.bf16.mxu0 0
        %789 = vmatpush2.bf16.msra.mxu0 0
        %790 = vmatprep.subr.bf16.mxu0 0
        %791 = vmatpush2.bf16.msra.mxu0 0
        %792 = vmatprep.mubr.bf16.mxu0 0
        %793 = vmatmul.mubr.bf16.gmra.mxu0 %v710
        %v794 = vpop.f32.mrf.mxu0
        %v795 = vadd.f32 0.0, %v794
        %v796 = vpop.f32.mrf.mxu0
        %v797 = vpop.f32.mrf.mxu0
        %v798 = vadd.f32 0.0, %v797
        %v799 = vpop.f32.mrf.mxu0
        %800 = vdwg.mxu0
        %v801 = vadd.f32 %v684, %v795
        %v802 = vadd.f32 %v685, %v798
        %v803 = vld [vmem:[%s2] sm:$0x1]
        %v805 = vlaneseq
        %v806 = vshrl.u32 %v805, 7
        %v807 = vsub.s32 0, %v806
        %v808 = vrot.slane %v803, %v807
        %v810 = vadd.f32 %v801, %v808
        %v811 = vadd.f32 %v802, %v808
        %v812 = vmin.f32 %v810, 20.0
        %v813 = vmin.f32 %v811, 20.0
        %v814 = vmul.f32 %v812, 1.442695
        %v815 = vpow.pop %v814
        %v816 = vmul.f32 %v813, 1.442695
        %v817 = vpow.pop %v816
        %v818 = vadd.f32 %v815, 2.0
        %v819 = vadd.f32 %v817, 2.0
        %v820 = vmul.f32 %v815, %v818
        %v821 = vmul.f32 %v817, %v819
        %v822 = vmul.f32 %v810, %v820
        %v823 = vmul.f32 %v811, %v821
        %v824 = vadd.f32 %v820, 2.0
        %v825 = vadd.f32 %v821, 2.0
        %v826 = vrcp.pop %v824
        %v827 = vrcp.pop %v825
        %v828 = vmul.f32 %v822, %v826
        %v829 = vmul.f32 %v823, %v827
        %v830 = vpack.c.bf16 %v829, %v828
        %v832 = vunpack.c.l.b16 %v830
        %v833 = vunpack.c.h.b16 %v830
        %v834 = vpack.c.b16 %v832, %v832
        %v835 = vpack.c.b16 %v833, %v833
        %838 = vst [vmem:[#allocation2 + $0x4] sm:$0xf] %v834
        %839 = vst [vmem:[#allocation2 + $0x8] sm:$0xf] %v835
        %v840 = vld [vmem:[#allocation2] sm:$0x8]
        %v841 = vld [vmem:[#allocation2 + $0x4] sm:$0xf]
        %v842 = vld [vmem:[#allocation2 + $0x8] sm:$0x7]
        %s843 = scalar_lea.vmem [#allocation3], 320
        %v844 = vld [vmem:[%s843] sm:$0xf]
        %v845 = vld [vmem:[%s843 + $0x4] sm:$0xf]
        %v846 = vld [vmem:[%s843 + $0x8] sm:$0xf]
        %v847 = vld [vmem:[%s843 + $0xc] sm:$0xf]
        %v848 = vld [vmem:[%s843 + $0x10] sm:$0xf]
        %v849 = vld [vmem:[%s843 + $0x14] sm:$0xf]
        %v850 = vld [vmem:[%s843 + $0x18] sm:$0xf]
        %v851 = vld [vmem:[%s843 + $0x1c] sm:$0xf]
        %v852 = vld [vmem:[%s843 + $0x20] sm:$0xf]
        %v853 = vld [vmem:[%s843 + $0x24] sm:$0xf]
        %v854 = vld [vmem:[%s843 + $0x28] sm:$0xf]
        %v855 = vld [vmem:[%s843 + $0x2c] sm:$0xf]
        %v856 = vld [vmem:[%s843 + $0x30] sm:$0xf]
        %v857 = vld [vmem:[%s843 + $0x34] sm:$0xf]
        %v858 = vld [vmem:[%s843 + $0x38] sm:$0xf]
        %v859 = vld [vmem:[%s843 + $0x3c] sm:$0xf]
        %v860 = vld [vmem:[#allocation2 + $0x8] sm:$0xf]
        %s861 = scalar_lea.vmem [#allocation3], 384
        %v862 = vld [vmem:[%s861] sm:$0xf]
        %v863 = vld [vmem:[%s861 + $0x4] sm:$0xf]
        %v864 = vld [vmem:[%s861 + $0x8] sm:$0xf]
        %v865 = vld [vmem:[%s861 + $0xc] sm:$0xf]
        %v866 = vld [vmem:[%s861 + $0x10] sm:$0xf]
        %v867 = vld [vmem:[%s861 + $0x14] sm:$0xf]
        %v868 = vld [vmem:[%s861 + $0x18] sm:$0xf]
        %v869 = vld [vmem:[%s861 + $0x1c] sm:$0xf]
        %v870 = vld [vmem:[%s861 + $0x20] sm:$0xf]
        %v871 = vld [vmem:[%s861 + $0x24] sm:$0xf]
        %v872 = vld [vmem:[%s861 + $0x28] sm:$0xf]
        %v873 = vld [vmem:[%s861 + $0x2c] sm:$0xf]
        %v874 = vld [vmem:[%s861 + $0x30] sm:$0xf]
        %v875 = vld [vmem:[%s861 + $0x34] sm:$0xf]
        %v876 = vld [vmem:[%s861 + $0x38] sm:$0xf]
        %v877 = vld [vmem:[%s861 + $0x3c] sm:$0xf]
        %v881 = vunpack.c.l.b16 %v840
        %v882 = vunpack.c.l.b16 %v841
        %v883 = vunpack.c.l.b16 %v860
        %v884 = vpack.c.b16 %v882, %v881
        %v885 = vpack.c.b16 %v883, %v883
        %v887 = vshrl.u32 %v884, 16
        %v889 = vrot.slane %v887, 3
        %v890 = vshll.u32 %v884, 16
        %v892 = vrot.slane %v890, 4
        %v893 = vor.u32 %v889, %v892
        %v895 = vshrl.u32 %v885, 16
        %v897 = vrot.slane %v895, 3
        %v898 = vshll.u32 %v885, 16
        %v900 = vrot.slane %v898, 4
        %v901 = vor.u32 %v897, %v900
        %v902 = vsel %vm238, %v893, %v901
        %v920 = vunpack.c.l.b16 %v862
        %v921 = vunpack.c.l.b16 %v863
        %v922 = vunpack.c.l.b16 %v864
        %v923 = vunpack.c.l.b16 %v865
        %v924 = vunpack.c.l.b16 %v866
        %v925 = vunpack.c.l.b16 %v867
        %v926 = vunpack.c.l.b16 %v868
        %v927 = vunpack.c.l.b16 %v869
        %v928 = vunpack.c.l.b16 %v870
        %v929 = vunpack.c.l.b16 %v871
        %v930 = vunpack.c.l.b16 %v872
        %v931 = vunpack.c.l.b16 %v873
        %v932 = vunpack.c.l.b16 %v874
        %v933 = vunpack.c.l.b16 %v875
        %v934 = vunpack.c.l.b16 %v876
        %v935 = vunpack.c.l.b16 %v877
        %v936 = vpack.c.b16 %v921, %v920
        %v937 = vpack.c.b16 %v923, %v922
        %v938 = vpack.c.b16 %v925, %v924
        %v939 = vpack.c.b16 %v927, %v926
        %v940 = vpack.c.b16 %v929, %v928
        %v941 = vpack.c.b16 %v931, %v930
        %v942 = vpack.c.b16 %v933, %v932
        %v943 = vpack.c.b16 %v935, %v934
        %952 = vmatprep.subr.bf16.mxu0 0
        %953 = vmatpush1.bf16.msra.mxu0 %v943
        %954 = vmatprep.subr.bf16.mxu0 0
        %955 = vmatpush1.bf16.msra.mxu0 %v942
        %956 = vmatprep.subr.bf16.mxu0 0
        %957 = vmatpush1.bf16.msra.mxu0 %v941
        %958 = vmatprep.subr.bf16.mxu0 0
        %959 = vmatpush1.bf16.msra.mxu0 %v940
        %960 = vmatprep.subr.bf16.mxu0 0
        %961 = vmatpush1.bf16.msra.mxu0 %v939
        %962 = vmatprep.subr.bf16.mxu0 0
        %963 = vmatpush1.bf16.msra.mxu0 %v938
        %964 = vmatprep.subr.bf16.mxu0 0
        %965 = vmatpush1.bf16.msra.mxu0 %v937
        %966 = vmatprep.subr.bf16.mxu0 0
        %967 = vmatpush1.bf16.msra.mxu0 %v936
        %968 = vmatprep.subr.bf16.mxu0 0
        %969 = vmatpush2.bf16.msra.mxu0 0
        %970 = vmatprep.subr.bf16.mxu0 0
        %971 = vmatpush2.bf16.msra.mxu0 0
        %972 = vmatprep.subr.bf16.mxu0 0
        %973 = vmatpush2.bf16.msra.mxu0 0
        %974 = vmatprep.subr.bf16.mxu0 0
        %975 = vmatpush2.bf16.msra.mxu0 0
        %976 = vmatprep.subr.bf16.mxu0 0
        %977 = vmatpush2.bf16.msra.mxu0 0
        %978 = vmatprep.subr.bf16.mxu0 0
        %979 = vmatpush2.bf16.msra.mxu0 0
        %980 = vmatprep.subr.bf16.mxu0 0
        %981 = vmatpush2.bf16.msra.mxu0 0
        %982 = vmatprep.subr.bf16.mxu0 0
        %983 = vmatpush2.bf16.msra.mxu0 0
        %984 = vmatprep.mubr.bf16.mxu0 0
        %985 = vmatmul.mubr.bf16.gmra.mxu0 %v902
        %v986 = vpop.f32.mrf.mxu0
        %v987 = vadd.f32 0.0, %v986
        %v988 = vpop.f32.mrf.mxu0
        %v989 = vpop.f32.mrf.mxu0
        %v990 = vadd.f32 0.0, %v989
        %v991 = vpop.f32.mrf.mxu0
        %992 = vdwg.mxu0
        %v994 = vunpack.c.l.b16 %v842
        %v995 = vpack.c.b16 %v994, %v994
        %v996 = vrot.slane %v884, 3
        %v997 = vrot.slane %v995, 3
        %v998 = vsel %vm349, %v996, %v997
        %v1016 = vunpack.c.l.b16 %v844
        %v1017 = vunpack.c.l.b16 %v845
        %v1018 = vunpack.c.l.b16 %v846
        %v1019 = vunpack.c.l.b16 %v847
        %v1020 = vunpack.c.l.b16 %v848
        %v1021 = vunpack.c.l.b16 %v849
        %v1022 = vunpack.c.l.b16 %v850
        %v1023 = vunpack.c.l.b16 %v851
        %v1024 = vunpack.c.l.b16 %v852
        %v1025 = vunpack.c.l.b16 %v853
        %v1026 = vunpack.c.l.b16 %v854
        %v1027 = vunpack.c.l.b16 %v855
        %v1028 = vunpack.c.l.b16 %v856
        %v1029 = vunpack.c.l.b16 %v857
        %v1030 = vunpack.c.l.b16 %v858
        %v1031 = vunpack.c.l.b16 %v859
        %v1032 = vpack.c.b16 %v1017, %v1016
        %v1033 = vpack.c.b16 %v1019, %v1018
        %v1034 = vpack.c.b16 %v1021, %v1020
        %v1035 = vpack.c.b16 %v1023, %v1022
        %v1036 = vpack.c.b16 %v1025, %v1024
        %v1037 = vpack.c.b16 %v1027, %v1026
        %v1038 = vpack.c.b16 %v1029, %v1028
        %v1039 = vpack.c.b16 %v1031, %v1030
        %1048 = vmatprep.subr.bf16.mxu0 0
        %1049 = vmatpush1.bf16.msra.mxu0 %v1039
        %1050 = vmatprep.subr.bf16.mxu0 0
        %1051 = vmatpush1.bf16.msra.mxu0 %v1038
        %1052 = vmatprep.subr.bf16.mxu0 0
        %1053 = vmatpush1.bf16.msra.mxu0 %v1037
        %1054 = vmatprep.subr.bf16.mxu0 0
        %1055 = vmatpush1.bf16.msra.mxu0 %v1036
        %1056 = vmatprep.subr.bf16.mxu0 0
        %1057 = vmatpush1.bf16.msra.mxu0 %v1035
        %1058 = vmatprep.subr.bf16.mxu0 0
        %1059 = vmatpush1.bf16.msra.mxu0 %v1034
        %1060 = vmatprep.subr.bf16.mxu0 0
        %1061 = vmatpush1.bf16.msra.mxu0 %v1033
        %1062 = vmatprep.subr.bf16.mxu0 0
        %1063 = vmatpush1.bf16.msra.mxu0 %v1032
        %1064 = vmatprep.subr.bf16.mxu0 0
        %1065 = vmatpush2.bf16.msra.mxu0 0
        %1066 = vmatprep.subr.bf16.mxu0 0
        %1067 = vmatpush2.bf16.msra.mxu0 0
        %1068 = vmatprep.subr.bf16.mxu0 0
        %1069 = vmatpush2.bf16.msra.mxu0 0
        %1070 = vmatprep.subr.bf16.mxu0 0
        %1071 = vmatpush2.bf16.msra.mxu0 0
        %1072 = vmatprep.subr.bf16.mxu0 0
        %1073 = vmatpush2.bf16.msra.mxu0 0
        %1074 = vmatprep.subr.bf16.mxu0 0
        %1075 = vmatpush2.bf16.msra.mxu0 0
        %1076 = vmatprep.subr.bf16.mxu0 0
        %1077 = vmatpush2.bf16.msra.mxu0 0
        %1078 = vmatprep.subr.bf16.mxu0 0
        %1079 = vmatpush2.bf16.msra.mxu0 0
        %1080 = vmatprep.mubr.bf16.mxu0 0
        %1081 = vmatmul.mubr.bf16.gmra.mxu0 %v998
        %v1082 = vpop.f32.mrf.mxu0
        %v1083 = vadd.f32 %v987, %v1082
        %v1084 = vpop.f32.mrf.mxu0
        %v1085 = vpop.f32.mrf.mxu0
        %v1086 = vadd.f32 %v990, %v1085
        %v1087 = vpop.f32.mrf.mxu0
        %1088 = vdwg.mxu0
        %s1089 = scalar_lea.vmem [#allocation3], 448
        %v1090 = vld [vmem:[%s1089] sm:$0xf]
        %v1091 = vld [vmem:[%s1089 + $0x4] sm:$0xf]
        %v1092 = vld [vmem:[%s1089 + $0x8] sm:$0xf]
        %v1093 = vld [vmem:[%s1089 + $0xc] sm:$0xf]
        %v1094 = vld [vmem:[%s1089 + $0x10] sm:$0xf]
        %v1095 = vld [vmem:[%s1089 + $0x14] sm:$0xf]
        %v1096 = vld [vmem:[%s1089 + $0x18] sm:$0xf]
        %v1097 = vld [vmem:[%s1089 + $0x1c] sm:$0xf]
        %v1098 = vld [vmem:[%s1089 + $0x20] sm:$0xf]
        %v1099 = vld [vmem:[%s1089 + $0x24] sm:$0xf]
        %v1100 = vld [vmem:[%s1089 + $0x28] sm:$0xf]
        %v1101 = vld [vmem:[%s1089 + $0x2c] sm:$0xf]
        %v1102 = vld [vmem:[%s1089 + $0x30] sm:$0xf]
        %v1103 = vld [vmem:[%s1089 + $0x34] sm:$0xf]
        %v1104 = vld [vmem:[%s1089 + $0x38] sm:$0xf]
        %v1105 = vld [vmem:[%s1089 + $0x3c] sm:$0xf]
        %v1106 = vpack.c.b16 %v883, %v882
        %v1124 = vunpack.c.l.b16 %v1090
        %v1125 = vunpack.c.l.b16 %v1091
        %v1126 = vunpack.c.l.b16 %v1092
        %v1127 = vunpack.c.l.b16 %v1093
        %v1128 = vunpack.c.l.b16 %v1094
        %v1129 = vunpack.c.l.b16 %v1095
        %v1130 = vunpack.c.l.b16 %v1096
        %v1131 = vunpack.c.l.b16 %v1097
        %v1132 = vunpack.c.l.b16 %v1098
        %v1133 = vunpack.c.l.b16 %v1099
        %v1134 = vunpack.c.l.b16 %v1100
        %v1135 = vunpack.c.l.b16 %v1101
        %v1136 = vunpack.c.l.b16 %v1102
        %v1137 = vunpack.c.l.b16 %v1103
        %v1138 = vunpack.c.l.b16 %v1104
        %v1139 = vunpack.c.l.b16 %v1105
        %v1140 = vpack.c.b16 %v1125, %v1124
        %v1141 = vpack.c.b16 %v1127, %v1126
        %v1142 = vpack.c.b16 %v1129, %v1128
        %v1143 = vpack.c.b16 %v1131, %v1130
        %v1144 = vpack.c.b16 %v1133, %v1132
        %v1145 = vpack.c.b16 %v1135, %v1134
        %v1146 = vpack.c.b16 %v1137, %v1136
        %v1147 = vpack.c.b16 %v1139, %v1138
        %1156 = vmatprep.subr.bf16.mxu0 0
        %1157 = vmatpush1.bf16.msra.mxu0 %v1147
        %1158 = vmatprep.subr.bf16.mxu0 0
        %1159 = vmatpush1.bf16.msra.mxu0 %v1146
        %1160 = vmatprep.subr.bf16.mxu0 0
        %1161 = vmatpush1.bf16.msra.mxu0 %v1145
        %1162 = vmatprep.subr.bf16.mxu0 0
        %1163 = vmatpush1.bf16.msra.mxu0 %v1144
        %1164 = vmatprep.subr.bf16.mxu0 0
        %1165 = vmatpush1.bf16.msra.mxu0 %v1143
        %1166 = vmatprep.subr.bf16.mxu0 0
        %1167 = vmatpush1.bf16.msra.mxu0 %v1142
        %1168 = vmatprep.subr.bf16.mxu0 0
        %1169 = vmatpush1.bf16.msra.mxu0 %v1141
        %1170 = vmatprep.subr.bf16.mxu0 0
        %1171 = vmatpush1.bf16.msra.mxu0 %v1140
        %1172 = vmatprep.subr.bf16.mxu0 0
        %1173 = vmatpush2.bf16.msra.mxu0 0
        %1174 = vmatprep.subr.bf16.mxu0 0
        %1175 = vmatpush2.bf16.msra.mxu0 0
        %1176 = vmatprep.subr.bf16.mxu0 0
        %1177 = vmatpush2.bf16.msra.mxu0 0
        %1178 = vmatprep.subr.bf16.mxu0 0
        %1179 = vmatpush2.bf16.msra.mxu0 0
        %1180 = vmatprep.subr.bf16.mxu0 0
        %1181 = vmatpush2.bf16.msra.mxu0 0
        %1182 = vmatprep.subr.bf16.mxu0 0
        %1183 = vmatpush2.bf16.msra.mxu0 0
        %1184 = vmatprep.subr.bf16.mxu0 0
        %1185 = vmatpush2.bf16.msra.mxu0 0
        %1186 = vmatprep.subr.bf16.mxu0 0
        %1187 = vmatpush2.bf16.msra.mxu0 0
        %1188 = vmatprep.mubr.bf16.mxu0 0
        %1189 = vmatmul.mubr.bf16.gmra.mxu0 %v1106
        %v1190 = vpop.f32.mrf.mxu0
        %v1191 = vadd.f32 0.0, %v1190
        %v1192 = vpop.f32.mrf.mxu0
        %v1193 = vpop.f32.mrf.mxu0
        %v1194 = vadd.f32 0.0, %v1193
        %v1195 = vpop.f32.mrf.mxu0
        %1196 = vdwg.mxu0
        %v1197 = vadd.f32 %v1083, %v1191
        %v1198 = vadd.f32 %v1086, %v1194
        %v1199 = vld [vmem:[#allocation2 + $0x4] sm:$0xf]
        %v1200 = vld [vmem:[#allocation2 + $0x8] sm:$0xf]
        %v1201 = vld [vmem:[#allocation2 + $0xc] sm:$0x1]
        %s1202 = scalar_lea.vmem [#allocation3], 512
        %v1203 = vld [vmem:[%s1202] sm:$0xf]
        %v1204 = vld [vmem:[%s1202 + $0x4] sm:$0xf]
        %v1205 = vld [vmem:[%s1202 + $0x8] sm:$0xf]
        %v1206 = vld [vmem:[%s1202 + $0xc] sm:$0xf]
        %v1207 = vld [vmem:[%s1202 + $0x10] sm:$0xf]
        %v1208 = vld [vmem:[%s1202 + $0x14] sm:$0xf]
        %v1209 = vld [vmem:[%s1202 + $0x18] sm:$0xf]
        %v1210 = vld [vmem:[%s1202 + $0x1c] sm:$0xf]
        %v1211 = vld [vmem:[%s1202 + $0x20] sm:$0xf]
        %v1212 = vld [vmem:[%s1202 + $0x24] sm:$0xf]
        %v1213 = vld [vmem:[%s1202 + $0x28] sm:$0xf]
        %v1214 = vld [vmem:[%s1202 + $0x2c] sm:$0xf]
        %v1215 = vld [vmem:[%s1202 + $0x30] sm:$0xf]
        %v1216 = vld [vmem:[%s1202 + $0x34] sm:$0xf]
        %v1217 = vld [vmem:[%s1202 + $0x38] sm:$0xf]
        %v1218 = vld [vmem:[%s1202 + $0x3c] sm:$0xf]
        %v1222 = vunpack.c.l.b16 %v1199
        %v1223 = vunpack.c.l.b16 %v1200
        %v1224 = vunpack.c.l.b16 %v1201
        %v1225 = vpack.c.b16 %v1223, %v1222
        %v1226 = vpack.c.b16 %v1224, %v1224
        %v1228 = vshrl.u32 %v1225, 16
        %v1230 = vshll.u32 %v1225, 16
        %v1232 = vrot.slane %v1230, 1
        %v1233 = vor.u32 %v1228, %v1232
        %v1235 = vshll.u32 %v1226, 16
        %v1237 = vrot.slane %v1235, 1
        %v1238 = vsel %vm581, %v1233, %v1237
        %v1256 = vunpack.c.l.b16 %v1203
        %v1257 = vunpack.c.l.b16 %v1204
        %v1258 = vunpack.c.l.b16 %v1205
        %v1259 = vunpack.c.l.b16 %v1206
        %v1260 = vunpack.c.l.b16 %v1207
        %v1261 = vunpack.c.l.b16 %v1208
        %v1262 = vunpack.c.l.b16 %v1209
        %v1263 = vunpack.c.l.b16 %v1210
        %v1264 = vunpack.c.l.b16 %v1211
        %v1265 = vunpack.c.l.b16 %v1212
        %v1266 = vunpack.c.l.b16 %v1213
        %v1267 = vunpack.c.l.b16 %v1214
        %v1268 = vunpack.c.l.b16 %v1215
        %v1269 = vunpack.c.l.b16 %v1216
        %v1270 = vunpack.c.l.b16 %v1217
        %v1271 = vunpack.c.l.b16 %v1218
        %v1272 = vpack.c.b16 %v1257, %v1256
        %v1273 = vpack.c.b16 %v1259, %v1258
        %v1274 = vpack.c.b16 %v1261, %v1260
        %v1275 = vpack.c.b16 %v1263, %v1262
        %v1276 = vpack.c.b16 %v1265, %v1264
        %v1277 = vpack.c.b16 %v1267, %v1266
        %v1278 = vpack.c.b16 %v1269, %v1268
        %v1279 = vpack.c.b16 %v1271, %v1270
        %1288 = vmatprep.subr.bf16.mxu0 0
        %1289 = vmatpush1.bf16.msra.mxu0 %v1279
        %1290 = vmatprep.subr.bf16.mxu0 0
        %1291 = vmatpush1.bf16.msra.mxu0 %v1278
        %1292 = vmatprep.subr.bf16.mxu0 0
        %1293 = vmatpush1.bf16.msra.mxu0 %v1277
        %1294 = vmatprep.subr.bf16.mxu0 0
        %1295 = vmatpush1.bf16.msra.mxu0 %v1276
        %1296 = vmatprep.subr.bf16.mxu0 0
        %1297 = vmatpush1.bf16.msra.mxu0 %v1275
        %1298 = vmatprep.subr.bf16.mxu0 0
        %1299 = vmatpush1.bf16.msra.mxu0 %v1274
        %1300 = vmatprep.subr.bf16.mxu0 0
        %1301 = vmatpush1.bf16.msra.mxu0 %v1273
        %1302 = vmatprep.subr.bf16.mxu0 0
        %1303 = vmatpush1.bf16.msra.mxu0 %v1272
        %1304 = vmatprep.subr.bf16.mxu0 0
        %1305 = vmatpush2.bf16.msra.mxu0 0
        %1306 = vmatprep.subr.bf16.mxu0 0
        %1307 = vmatpush2.bf16.msra.mxu0 0
        %1308 = vmatprep.subr.bf16.mxu0 0
        %1309 = vmatpush2.bf16.msra.mxu0 0
        %1310 = vmatprep.subr.bf16.mxu0 0
        %1311 = vmatpush2.bf16.msra.mxu0 0
        %1312 = vmatprep.subr.bf16.mxu0 0
        %1313 = vmatpush2.bf16.msra.mxu0 0
        %1314 = vmatprep.subr.bf16.mxu0 0
        %1315 = vmatpush2.bf16.msra.mxu0 0
        %1316 = vmatprep.subr.bf16.mxu0 0
        %1317 = vmatpush2.bf16.msra.mxu0 0
        %1318 = vmatprep.subr.bf16.mxu0 0
        %1319 = vmatpush2.bf16.msra.mxu0 0
        %1320 = vmatprep.mubr.bf16.mxu0 0
        %1321 = vmatmul.mubr.bf16.gmra.mxu0 %v1238
        %v1322 = vpop.f32.mrf.mxu0
        %v1323 = vadd.f32 0.0, %v1322
        %v1324 = vpop.f32.mrf.mxu0
        %v1325 = vpop.f32.mrf.mxu0
        %v1326 = vadd.f32 0.0, %v1325
        %v1327 = vpop.f32.mrf.mxu0
        %1328 = vdwg.mxu0
        %v1329 = vadd.f32 %v1197, %v1323
        %v1330 = vadd.f32 %v1198, %v1326
        %v1331 = vld [vmem:[#allocation2 + $0x4] sm:$0xe]
        %s1332 = scalar_lea.vmem [#allocation3], 576
        %v1333 = vld [vmem:[%s1332] sm:$0xf]
        %v1334 = vld [vmem:[%s1332 + $0x4] sm:$0xf]
        %v1335 = vld [vmem:[%s1332 + $0x8] sm:$0xf]
        %v1336 = vld [vmem:[%s1332 + $0xc] sm:$0xf]
        %v1337 = vld [vmem:[%s1332 + $0x10] sm:$0xf]
        %v1338 = vld [vmem:[%s1332 + $0x14] sm:$0xf]
        %v1339 = vld [vmem:[%s1332 + $0x18] sm:$0xf]
        %v1340 = vld [vmem:[%s1332 + $0x1c] sm:$0xf]
        %v1341 = vld [vmem:[%s1332 + $0x20] sm:$0xf]
        %v1342 = vld [vmem:[%s1332 + $0x24] sm:$0xf]
        %v1343 = vld [vmem:[%s1332 + $0x28] sm:$0xf]
        %v1344 = vld [vmem:[%s1332 + $0x2c] sm:$0xf]
        %v1345 = vld [vmem:[%s1332 + $0x30] sm:$0xf]
        %v1346 = vld [vmem:[%s1332 + $0x34] sm:$0xf]
        %v1347 = vld [vmem:[%s1332 + $0x38] sm:$0xf]
        %v1348 = vld [vmem:[%s1332 + $0x3c] sm:$0xf]
        %v1350 = vunpack.c.l.b16 %v1331
        %v1351 = vpack.c.b16 %v1223, %v1350
        %v1352 = vrot.slane %v1351, 1
        %v1353 = vrot.slane %v1226, 1
        %v1354 = vsel %vm707, %v1352, %v1353
        %v1372 = vunpack.c.l.b16 %v1333
        %v1373 = vunpack.c.l.b16 %v1334
        %v1374 = vunpack.c.l.b16 %v1335
        %v1375 = vunpack.c.l.b16 %v1336
        %v1376 = vunpack.c.l.b16 %v1337
        %v1377 = vunpack.c.l.b16 %v1338
        %v1378 = vunpack.c.l.b16 %v1339
        %v1379 = vunpack.c.l.b16 %v1340
        %v1380 = vunpack.c.l.b16 %v1341
        %v1381 = vunpack.c.l.b16 %v1342
        %v1382 = vunpack.c.l.b16 %v1343
        %v1383 = vunpack.c.l.b16 %v1344
        %v1384 = vunpack.c.l.b16 %v1345
        %v1385 = vunpack.c.l.b16 %v1346
        %v1386 = vunpack.c.l.b16 %v1347
        %v1387 = vunpack.c.l.b16 %v1348
        %v1388 = vpack.c.b16 %v1373, %v1372
        %v1389 = vpack.c.b16 %v1375, %v1374
        %v1390 = vpack.c.b16 %v1377, %v1376
        %v1391 = vpack.c.b16 %v1379, %v1378
        %v1392 = vpack.c.b16 %v1381, %v1380
        %v1393 = vpack.c.b16 %v1383, %v1382
        %v1394 = vpack.c.b16 %v1385, %v1384
        %v1395 = vpack.c.b16 %v1387, %v1386
        %1404 = vmatprep.subr.bf16.mxu0 0
        %1405 = vmatpush1.bf16.msra.mxu0 %v1395
        %1406 = vmatprep.subr.bf16.mxu0 0
        %1407 = vmatpush1.bf16.msra.mxu0 %v1394
        %1408 = vmatprep.subr.bf16.mxu0 0
        %1409 = vmatpush1.bf16.msra.mxu0 %v1393
        %1410 = vmatprep.subr.bf16.mxu0 0
        %1411 = vmatpush1.bf16.msra.mxu0 %v1392
        %1412 = vmatprep.subr.bf16.mxu0 0
        %1413 = vmatpush1.bf16.msra.mxu0 %v1391
        %1414 = vmatprep.subr.bf16.mxu0 0
        %1415 = vmatpush1.bf16.msra.mxu0 %v1390
        %1416 = vmatprep.subr.bf16.mxu0 0
        %1417 = vmatpush1.bf16.msra.mxu0 %v1389
        %1418 = vmatprep.subr.bf16.mxu0 0
        %1419 = vmatpush1.bf16.msra.mxu0 %v1388
        %1420 = vmatprep.subr.bf16.mxu0 0
        %1421 = vmatpush2.bf16.msra.mxu0 0
        %1422 = vmatprep.subr.bf16.mxu0 0
        %1423 = vmatpush2.bf16.msra.mxu0 0
        %1424 = vmatprep.subr.bf16.mxu0 0
        %1425 = vmatpush2.bf16.msra.mxu0 0
        %1426 = vmatprep.subr.bf16.mxu0 0
        %1427 = vmatpush2.bf16.msra.mxu0 0
        %1428 = vmatprep.subr.bf16.mxu0 0
        %1429 = vmatpush2.bf16.msra.mxu0 0
        %1430 = vmatprep.subr.bf16.mxu0 0
        %1431 = vmatpush2.bf16.msra.mxu0 0
        %1432 = vmatprep.subr.bf16.mxu0 0
        %1433 = vmatpush2.bf16.msra.mxu0 0
        %1434 = vmatprep.subr.bf16.mxu0 0
        %1435 = vmatpush2.bf16.msra.mxu0 0
        %1436 = vmatprep.mubr.bf16.mxu0 0
        %1437 = vmatmul.mubr.bf16.gmra.mxu0 %v1354
        %v1438 = vpop.f32.mrf.mxu0
        %v1439 = vadd.f32 0.0, %v1438
        %v1440 = vpop.f32.mrf.mxu0
        %v1441 = vpop.f32.mrf.mxu0
        %v1442 = vadd.f32 0.0, %v1441
        %v1443 = vpop.f32.mrf.mxu0
        %1444 = vdwg.mxu0
        %v1445 = vadd.f32 %v1329, %v1439
        %v1446 = vadd.f32 %v1330, %v1442
        %s1447 = scalar_lea.vmem %s2, 1
        %v1448 = vld [vmem:[%s1447] sm:$0x1]
        %v1450 = vlaneseq
        %v1451 = vshrl.u32 %v1450, 7
        %v1452 = vsub.s32 0, %v1451
        %v1453 = vrot.slane %v1448, %v1452
        %v1455 = vadd.f32 %v1445, %v1453
        %v1456 = vadd.f32 %v1446, %v1453
        %v1457 = vmin.f32 %v1455, 20.0
        %v1458 = vmin.f32 %v1456, 20.0
        %v1459 = vmul.f32 %v1457, 1.442695
        %v1460 = vpow.pop %v1459
        %v1461 = vmul.f32 %v1458, 1.442695
        %v1462 = vpow.pop %v1461
        %v1463 = vadd.f32 %v1460, 2.0
        %v1464 = vadd.f32 %v1462, 2.0
        %v1465 = vmul.f32 %v1460, %v1463
        %v1466 = vmul.f32 %v1462, %v1464
        %v1467 = vmul.f32 %v1455, %v1465
        %v1468 = vmul.f32 %v1456, %v1466
        %v1469 = vadd.f32 %v1465, 2.0
        %v1470 = vadd.f32 %v1466, 2.0
        %v1471 = vrcp.pop %v1469
        %v1472 = vrcp.pop %v1470
        %v1473 = vmul.f32 %v1467, %v1471
        %v1474 = vmul.f32 %v1468, %v1472
        %v1475 = vpack.c.bf16 %v1474, %v1473
        %v1477 = vunpack.c.l.b16 %v1475
        %v1478 = vunpack.c.h.b16 %v1475
        %v1479 = vpack.c.b16 %v1477, %v1477
        %v1480 = vpack.c.b16 %v1478, %v1478
        %1483 = vst [vmem:[#allocation2 + $0x4] sm:$0xf] %v1479
        %1484 = vst [vmem:[#allocation2 + $0x8] sm:$0xf] %v1480
        %v1485 = vld [vmem:[#allocation2] sm:$0x8]
        %v1486 = vld [vmem:[#allocation2 + $0x4] sm:$0xf]
        %v1487 = vld [vmem:[#allocation2 + $0x8] sm:$0x7]
        %s1488 = scalar_lea.vmem [#allocation3], 640
        %v1489 = vld [vmem:[%s1488] sm:$0xf]
        %v1490 = vld [vmem:[%s1488 + $0x4] sm:$0xf]
        %v1491 = vld [vmem:[%s1488 + $0x8] sm:$0xf]
        %v1492 = vld [vmem:[%s1488 + $0xc] sm:$0xf]
        %v1493 = vld [vmem:[%s1488 + $0x10] sm:$0xf]
        %v1494 = vld [vmem:[%s1488 + $0x14] sm:$0xf]
        %v1495 = vld [vmem:[%s1488 + $0x18] sm:$0xf]
        %v1496 = vld [vmem:[%s1488 + $0x1c] sm:$0xf]
        %v1497 = vld [vmem:[%s1488 + $0x20] sm:$0xf]
        %v1498 = vld [vmem:[%s1488 + $0x24] sm:$0xf]
        %v1499 = vld [vmem:[%s1488 + $0x28] sm:$0xf]
        %v1500 = vld [vmem:[%s1488 + $0x2c] sm:$0xf]
        %v1501 = vld [vmem:[%s1488 + $0x30] sm:$0xf]
        %v1502 = vld [vmem:[%s1488 + $0x34] sm:$0xf]
        %v1503 = vld [vmem:[%s1488 + $0x38] sm:$0xf]
        %v1504 = vld [vmem:[%s1488 + $0x3c] sm:$0xf]
        %v1505 = vld [vmem:[#allocation2 + $0x8] sm:$0xf]
        %s1506 = scalar_lea.vmem [#allocation3], 704
        %v1507 = vld [vmem:[%s1506] sm:$0xf]
        %v1508 = vld [vmem:[%s1506 + $0x4] sm:$0xf]
        %v1509 = vld [vmem:[%s1506 + $0x8] sm:$0xf]
        %v1510 = vld [vmem:[%s1506 + $0xc] sm:$0xf]
        %v1511 = vld [vmem:[%s1506 + $0x10] sm:$0xf]
        %v1512 = vld [vmem:[%s1506 + $0x14] sm:$0xf]
        %v1513 = vld [vmem:[%s1506 + $0x18] sm:$0xf]
        %v1514 = vld [vmem:[%s1506 + $0x1c] sm:$0xf]
        %v1515 = vld [vmem:[%s1506 + $0x20] sm:$0xf]
        %v1516 = vld [vmem:[%s1506 + $0x24] sm:$0xf]
        %v1517 = vld [vmem:[%s1506 + $0x28] sm:$0xf]
        %v1518 = vld [vmem:[%s1506 + $0x2c] sm:$0xf]
        %v1519 = vld [vmem:[%s1506 + $0x30] sm:$0xf]
        %v1520 = vld [vmem:[%s1506 + $0x34] sm:$0xf]
        %v1521 = vld [vmem:[%s1506 + $0x38] sm:$0xf]
        %v1522 = vld [vmem:[%s1506 + $0x3c] sm:$0xf]
        %v1526 = vunpack.c.l.b16 %v1485
        %v1527 = vunpack.c.l.b16 %v1486
        %v1528 = vunpack.c.l.b16 %v1505
        %v1529 = vpack.c.b16 %v1527, %v1526
        %v1530 = vpack.c.b16 %v1528, %v1528
        %v1532 = vshrl.u32 %v1529, 16
        %v1534 = vrot.slane %v1532, 3
        %v1535 = vshll.u32 %v1529, 16
        %v1537 = vrot.slane %v1535, 4
        %v1538 = vor.u32 %v1534, %v1537
        %v1540 = vshrl.u32 %v1530, 16
        %v1542 = vrot.slane %v1540, 3
        %v1543 = vshll.u32 %v1530, 16
        %v1545 = vrot.slane %v1543, 4
        %v1546 = vor.u32 %v1542, %v1545
        %v1547 = vsel %vm238, %v1538, %v1546
        %v1565 = vunpack.c.l.b16 %v1507
        %v1566 = vunpack.c.l.b16 %v1508
        %v1567 = vunpack.c.l.b16 %v1509
        %v1568 = vunpack.c.l.b16 %v1510
        %v1569 = vunpack.c.l.b16 %v1511
        %v1570 = vunpack.c.l.b16 %v1512
        %v1571 = vunpack.c.l.b16 %v1513
        %v1572 = vunpack.c.l.b16 %v1514
        %v1573 = vunpack.c.l.b16 %v1515
        %v1574 = vunpack.c.l.b16 %v1516
        %v1575 = vunpack.c.l.b16 %v1517
        %v1576 = vunpack.c.l.b16 %v1518
        %v1577 = vunpack.c.l.b16 %v1519
        %v1578 = vunpack.c.l.b16 %v1520
        %v1579 = vunpack.c.l.b16 %v1521
        %v1580 = vunpack.c.l.b16 %v1522
        %v1581 = vpack.c.b16 %v1566, %v1565
        %v1582 = vpack.c.b16 %v1568, %v1567
        %v1583 = vpack.c.b16 %v1570, %v1569
        %v1584 = vpack.c.b16 %v1572, %v1571
        %v1585 = vpack.c.b16 %v1574, %v1573
        %v1586 = vpack.c.b16 %v1576, %v1575
        %v1587 = vpack.c.b16 %v1578, %v1577
        %v1588 = vpack.c.b16 %v1580, %v1579
        %1597 = vmatprep.subr.bf16.mxu0 0
        %1598 = vmatpush1.bf16.msra.mxu0 %v1588
        %1599 = vmatprep.subr.bf16.mxu0 0
        %1600 = vmatpush1.bf16.msra.mxu0 %v1587
        %1601 = vmatprep.subr.bf16.mxu0 0
        %1602 = vmatpush1.bf16.msra.mxu0 %v1586
        %1603 = vmatprep.subr.bf16.mxu0 0
        %1604 = vmatpush1.bf16.msra.mxu0 %v1585
        %1605 = vmatprep.subr.bf16.mxu0 0
        %1606 = vmatpush1.bf16.msra.mxu0 %v1584
        %1607 = vmatprep.subr.bf16.mxu0 0
        %1608 = vmatpush1.bf16.msra.mxu0 %v1583
        %1609 = vmatprep.subr.bf16.mxu0 0
        %1610 = vmatpush1.bf16.msra.mxu0 %v1582
        %1611 = vmatprep.subr.bf16.mxu0 0
        %1612 = vmatpush1.bf16.msra.mxu0 %v1581
        %1613 = vmatprep.subr.bf16.mxu0 0
        %1614 = vmatpush2.bf16.msra.mxu0 0
        %1615 = vmatprep.subr.bf16.mxu0 0
        %1616 = vmatpush2.bf16.msra.mxu0 0
        %1617 = vmatprep.subr.bf16.mxu0 0
        %1618 = vmatpush2.bf16.msra.mxu0 0
        %1619 = vmatprep.subr.bf16.mxu0 0
        %1620 = vmatpush2.bf16.msra.mxu0 0
        %1621 = vmatprep.subr.bf16.mxu0 0
        %1622 = vmatpush2.bf16.msra.mxu0 0
        %1623 = vmatprep.subr.bf16.mxu0 0
        %1624 = vmatpush2.bf16.msra.mxu0 0
        %1625 = vmatprep.subr.bf16.mxu0 0
        %1626 = vmatpush2.bf16.msra.mxu0 0
        %1627 = vmatprep.subr.bf16.mxu0 0
        %1628 = vmatpush2.bf16.msra.mxu0 0
        %1629 = vmatprep.mubr.bf16.mxu0 0
        %1630 = vmatmul.mubr.bf16.gmra.mxu0 %v1547
        %v1631 = vpop.f32.mrf.mxu0
        %v1632 = vadd.f32 0.0, %v1631
        %v1633 = vpop.f32.mrf.mxu0
        %v1634 = vpop.f32.mrf.mxu0
        %v1635 = vadd.f32 0.0, %v1634
        %v1636 = vpop.f32.mrf.mxu0
        %1637 = vdwg.mxu0
        %v1639 = vunpack.c.l.b16 %v1487
        %v1640 = vpack.c.b16 %v1639, %v1639
        %v1641 = vrot.slane %v1529, 3
        %v1642 = vrot.slane %v1640, 3
        %v1643 = vsel %vm349, %v1641, %v1642
        %v1661 = vunpack.c.l.b16 %v1489
        %v1662 = vunpack.c.l.b16 %v1490
        %v1663 = vunpack.c.l.b16 %v1491
        %v1664 = vunpack.c.l.b16 %v1492
        %v1665 = vunpack.c.l.b16 %v1493
        %v1666 = vunpack.c.l.b16 %v1494
        %v1667 = vunpack.c.l.b16 %v1495
        %v1668 = vunpack.c.l.b16 %v1496
        %v1669 = vunpack.c.l.b16 %v1497
        %v1670 = vunpack.c.l.b16 %v1498
        %v1671 = vunpack.c.l.b16 %v1499
        %v1672 = vunpack.c.l.b16 %v1500
        %v1673 = vunpack.c.l.b16 %v1501
        %v1674 = vunpack.c.l.b16 %v1502
        %v1675 = vunpack.c.l.b16 %v1503
        %v1676 = vunpack.c.l.b16 %v1504
        %v1677 = vpack.c.b16 %v1662, %v1661
        %v1678 = vpack.c.b16 %v1664, %v1663
        %v1679 = vpack.c.b16 %v1666, %v1665
        %v1680 = vpack.c.b16 %v1668, %v1667
        %v1681 = vpack.c.b16 %v1670, %v1669
        %v1682 = vpack.c.b16 %v1672, %v1671
        %v1683 = vpack.c.b16 %v1674, %v1673
        %v1684 = vpack.c.b16 %v1676, %v1675
        %1693 = vmatprep.subr.bf16.mxu0 0
        %1694 = vmatpush1.bf16.msra.mxu0 %v1684
        %1695 = vmatprep.subr.bf16.mxu0 0
        %1696 = vmatpush1.bf16.msra.mxu0 %v1683
        %1697 = vmatprep.subr.bf16.mxu0 0
        %1698 = vmatpush1.bf16.msra.mxu0 %v1682
        %1699 = vmatprep.subr.bf16.mxu0 0
        %1700 = vmatpush1.bf16.msra.mxu0 %v1681
        %1701 = vmatprep.subr.bf16.mxu0 0
        %1702 = vmatpush1.bf16.msra.mxu0 %v1680
        %1703 = vmatprep.subr.bf16.mxu0 0
        %1704 = vmatpush1.bf16.msra.mxu0 %v1679
        %1705 = vmatprep.subr.bf16.mxu0 0
        %1706 = vmatpush1.bf16.msra.mxu0 %v1678
        %1707 = vmatprep.subr.bf16.mxu0 0
        %1708 = vmatpush1.bf16.msra.mxu0 %v1677
        %1709 = vmatprep.subr.bf16.mxu0 0
        %1710 = vmatpush2.bf16.msra.mxu0 0
        %1711 = vmatprep.subr.bf16.mxu0 0
        %1712 = vmatpush2.bf16.msra.mxu0 0
        %1713 = vmatprep.subr.bf16.mxu0 0
        %1714 = vmatpush2.bf16.msra.mxu0 0
        %1715 = vmatprep.subr.bf16.mxu0 0
        %1716 = vmatpush2.bf16.msra.mxu0 0
        %1717 = vmatprep.subr.bf16.mxu0 0
        %1718 = vmatpush2.bf16.msra.mxu0 0
        %1719 = vmatprep.subr.bf16.mxu0 0
        %1720 = vmatpush2.bf16.msra.mxu0 0
        %1721 = vmatprep.subr.bf16.mxu0 0
        %1722 = vmatpush2.bf16.msra.mxu0 0
        %1723 = vmatprep.subr.bf16.mxu0 0
        %1724 = vmatpush2.bf16.msra.mxu0 0
        %1725 = vmatprep.mubr.bf16.mxu0 0
        %1726 = vmatmul.mubr.bf16.gmra.mxu0 %v1643
        %v1727 = vpop.f32.mrf.mxu0
        %v1728 = vadd.f32 %v1632, %v1727
        %v1729 = vpop.f32.mrf.mxu0
        %v1730 = vpop.f32.mrf.mxu0
        %v1731 = vadd.f32 %v1635, %v1730
        %v1732 = vpop.f32.mrf.mxu0
        %1733 = vdwg.mxu0
        %s1734 = scalar_lea.vmem [#allocation3], 768
        %v1735 = vld [vmem:[%s1734] sm:$0xf]
        %v1736 = vld [vmem:[%s1734 + $0x4] sm:$0xf]
        %v1737 = vld [vmem:[%s1734 + $0x8] sm:$0xf]
        %v1738 = vld [vmem:[%s1734 + $0xc] sm:$0xf]
        %v1739 = vld [vmem:[%s1734 + $0x10] sm:$0xf]
        %v1740 = vld [vmem:[%s1734 + $0x14] sm:$0xf]
        %v1741 = vld [vmem:[%s1734 + $0x18] sm:$0xf]
        %v1742 = vld [vmem:[%s1734 + $0x1c] sm:$0xf]
        %v1743 = vld [vmem:[%s1734 + $0x20] sm:$0xf]
        %v1744 = vld [vmem:[%s1734 + $0x24] sm:$0xf]
        %v1745 = vld [vmem:[%s1734 + $0x28] sm:$0xf]
        %v1746 = vld [vmem:[%s1734 + $0x2c] sm:$0xf]
        %v1747 = vld [vmem:[%s1734 + $0x30] sm:$0xf]
        %v1748 = vld [vmem:[%s1734 + $0x34] sm:$0xf]
        %v1749 = vld [vmem:[%s1734 + $0x38] sm:$0xf]
        %v1750 = vld [vmem:[%s1734 + $0x3c] sm:$0xf]
        %v1751 = vpack.c.b16 %v1528, %v1527
        %v1769 = vunpack.c.l.b16 %v1735
        %v1770 = vunpack.c.l.b16 %v1736
        %v1771 = vunpack.c.l.b16 %v1737
        %v1772 = vunpack.c.l.b16 %v1738
        %v1773 = vunpack.c.l.b16 %v1739
        %v1774 = vunpack.c.l.b16 %v1740
        %v1775 = vunpack.c.l.b16 %v1741
        %v1776 = vunpack.c.l.b16 %v1742
        %v1777 = vunpack.c.l.b16 %v1743
        %v1778 = vunpack.c.l.b16 %v1744
        %v1779 = vunpack.c.l.b16 %v1745
        %v1780 = vunpack.c.l.b16 %v1746
        %v1781 = vunpack.c.l.b16 %v1747
        %v1782 = vunpack.c.l.b16 %v1748
        %v1783 = vunpack.c.l.b16 %v1749
        %v1784 = vunpack.c.l.b16 %v1750
        %v1785 = vpack.c.b16 %v1770, %v1769
        %v1786 = vpack.c.b16 %v1772, %v1771
        %v1787 = vpack.c.b16 %v1774, %v1773
        %v1788 = vpack.c.b16 %v1776, %v1775
        %v1789 = vpack.c.b16 %v1778, %v1777
        %v1790 = vpack.c.b16 %v1780, %v1779
        %v1791 = vpack.c.b16 %v1782, %v1781
        %v1792 = vpack.c.b16 %v1784, %v1783
        %1801 = vmatprep.subr.bf16.mxu0 0
        %1802 = vmatpush1.bf16.msra.mxu0 %v1792
        %1803 = vmatprep.subr.bf16.mxu0 0
        %1804 = vmatpush1.bf16.msra.mxu0 %v1791
        %1805 = vmatprep.subr.bf16.mxu0 0
        %1806 = vmatpush1.bf16.msra.mxu0 %v1790
        %1807 = vmatprep.subr.bf16.mxu0 0
        %1808 = vmatpush1.bf16.msra.mxu0 %v1789
        %1809 = vmatprep.subr.bf16.mxu0 0
        %1810 = vmatpush1.bf16.msra.mxu0 %v1788
        %1811 = vmatprep.subr.bf16.mxu0 0
        %1812 = vmatpush1.bf16.msra.mxu0 %v1787
        %1813 = vmatprep.subr.bf16.mxu0 0
        %1814 = vmatpush1.bf16.msra.mxu0 %v1786
        %1815 = vmatprep.subr.bf16.mxu0 0
        %1816 = vmatpush1.bf16.msra.mxu0 %v1785
        %1817 = vmatprep.subr.bf16.mxu0 0
        %1818 = vmatpush2.bf16.msra.mxu0 0
        %1819 = vmatprep.subr.bf16.mxu0 0
        %1820 = vmatpush2.bf16.msra.mxu0 0
        %1821 = vmatprep.subr.bf16.mxu0 0
        %1822 = vmatpush2.bf16.msra.mxu0 0
        %1823 = vmatprep.subr.bf16.mxu0 0
        %1824 = vmatpush2.bf16.msra.mxu0 0
        %1825 = vmatprep.subr.bf16.mxu0 0
        %1826 = vmatpush2.bf16.msra.mxu0 0
        %1827 = vmatprep.subr.bf16.mxu0 0
        %1828 = vmatpush2.bf16.msra.mxu0 0
        %1829 = vmatprep.subr.bf16.mxu0 0
        %1830 = vmatpush2.bf16.msra.mxu0 0
        %1831 = vmatprep.subr.bf16.mxu0 0
        %1832 = vmatpush2.bf16.msra.mxu0 0
        %1833 = vmatprep.mubr.bf16.mxu0 0
        %1834 = vmatmul.mubr.bf16.gmra.mxu0 %v1751
        %v1835 = vpop.f32.mrf.mxu0
        %v1836 = vadd.f32 0.0, %v1835
        %v1837 = vpop.f32.mrf.mxu0
        %v1838 = vpop.f32.mrf.mxu0
        %v1839 = vadd.f32 0.0, %v1838
        %v1840 = vpop.f32.mrf.mxu0
        %1841 = vdwg.mxu0
        %v1842 = vadd.f32 %v1728, %v1836
        %v1843 = vadd.f32 %v1731, %v1839
        %v1844 = vld [vmem:[#allocation2 + $0x4] sm:$0xf]
        %v1845 = vld [vmem:[#allocation2 + $0x8] sm:$0xf]
        %v1846 = vld [vmem:[#allocation2 + $0xc] sm:$0x1]
        %s1847 = scalar_lea.vmem [#allocation3], 832
        %v1848 = vld [vmem:[%s1847] sm:$0xf]
        %v1849 = vld [vmem:[%s1847 + $0x4] sm:$0xf]
        %v1850 = vld [vmem:[%s1847 + $0x8] sm:$0xf]
        %v1851 = vld [vmem:[%s1847 + $0xc] sm:$0xf]
        %v1852 = vld [vmem:[%s1847 + $0x10] sm:$0xf]
        %v1853 = vld [vmem:[%s1847 + $0x14] sm:$0xf]
        %v1854 = vld [vmem:[%s1847 + $0x18] sm:$0xf]
        %v1855 = vld [vmem:[%s1847 + $0x1c] sm:$0xf]
        %v1856 = vld [vmem:[%s1847 + $0x20] sm:$0xf]
        %v1857 = vld [vmem:[%s1847 + $0x24] sm:$0xf]
        %v1858 = vld [vmem:[%s1847 + $0x28] sm:$0xf]
        %v1859 = vld [vmem:[%s1847 + $0x2c] sm:$0xf]
        %v1860 = vld [vmem:[%s1847 + $0x30] sm:$0xf]
        %v1861 = vld [vmem:[%s1847 + $0x34] sm:$0xf]
        %v1862 = vld [vmem:[%s1847 + $0x38] sm:$0xf]
        %v1863 = vld [vmem:[%s1847 + $0x3c] sm:$0xf]
        %v1867 = vunpack.c.l.b16 %v1844
        %v1868 = vunpack.c.l.b16 %v1845
        %v1869 = vunpack.c.l.b16 %v1846
        %v1870 = vpack.c.b16 %v1868, %v1867
        %v1871 = vpack.c.b16 %v1869, %v1869
        %v1873 = vshrl.u32 %v1870, 16
        %v1875 = vshll.u32 %v1870, 16
        %v1877 = vrot.slane %v1875, 1
        %v1878 = vor.u32 %v1873, %v1877
        %v1880 = vshll.u32 %v1871, 16
        %v1882 = vrot.slane %v1880, 1
        %v1883 = vsel %vm581, %v1878, %v1882
        %v1901 = vunpack.c.l.b16 %v1848
        %v1902 = vunpack.c.l.b16 %v1849
        %v1903 = vunpack.c.l.b16 %v1850
        %v1904 = vunpack.c.l.b16 %v1851
        %v1905 = vunpack.c.l.b16 %v1852
        %v1906 = vunpack.c.l.b16 %v1853
        %v1907 = vunpack.c.l.b16 %v1854
        %v1908 = vunpack.c.l.b16 %v1855
        %v1909 = vunpack.c.l.b16 %v1856
        %v1910 = vunpack.c.l.b16 %v1857
        %v1911 = vunpack.c.l.b16 %v1858
        %v1912 = vunpack.c.l.b16 %v1859
        %v1913 = vunpack.c.l.b16 %v1860
        %v1914 = vunpack.c.l.b16 %v1861
        %v1915 = vunpack.c.l.b16 %v1862
        %v1916 = vunpack.c.l.b16 %v1863
        %v1917 = vpack.c.b16 %v1902, %v1901
        %v1918 = vpack.c.b16 %v1904, %v1903
        %v1919 = vpack.c.b16 %v1906, %v1905
        %v1920 = vpack.c.b16 %v1908, %v1907
        %v1921 = vpack.c.b16 %v1910, %v1909
        %v1922 = vpack.c.b16 %v1912, %v1911
        %v1923 = vpack.c.b16 %v1914, %v1913
        %v1924 = vpack.c.b16 %v1916, %v1915
        %1933 = vmatprep.subr.bf16.mxu0 0
        %1934 = vmatpush1.bf16.msra.mxu0 %v1924
        %1935 = vmatprep.subr.bf16.mxu0 0
        %1936 = vmatpush1.bf16.msra.mxu0 %v1923
        %1937 = vmatprep.subr.bf16.mxu0 0
        %1938 = vmatpush1.bf16.msra.mxu0 %v1922
        %1939 = vmatprep.subr.bf16.mxu0 0
        %1940 = vmatpush1.bf16.msra.mxu0 %v1921
        %1941 = vmatprep.subr.bf16.mxu0 0
        %1942 = vmatpush1.bf16.msra.mxu0 %v1920
        %1943 = vmatprep.subr.bf16.mxu0 0
        %1944 = vmatpush1.bf16.msra.mxu0 %v1919
        %1945 = vmatprep.subr.bf16.mxu0 0
        %1946 = vmatpush1.bf16.msra.mxu0 %v1918
        %1947 = vmatprep.subr.bf16.mxu0 0
        %1948 = vmatpush1.bf16.msra.mxu0 %v1917
        %1949 = vmatprep.subr.bf16.mxu0 0
        %1950 = vmatpush2.bf16.msra.mxu0 0
        %1951 = vmatprep.subr.bf16.mxu0 0
        %1952 = vmatpush2.bf16.msra.mxu0 0
        %1953 = vmatprep.subr.bf16.mxu0 0
        %1954 = vmatpush2.bf16.msra.mxu0 0
        %1955 = vmatprep.subr.bf16.mxu0 0
        %1956 = vmatpush2.bf16.msra.mxu0 0
        %1957 = vmatprep.subr.bf16.mxu0 0
        %1958 = vmatpush2.bf16.msra.mxu0 0
        %1959 = vmatprep.subr.bf16.mxu0 0
        %1960 = vmatpush2.bf16.msra.mxu0 0
        %1961 = vmatprep.subr.bf16.mxu0 0
        %1962 = vmatpush2.bf16.msra.mxu0 0
        %1963 = vmatprep.subr.bf16.mxu0 0
        %1964 = vmatpush2.bf16.msra.mxu0 0
        %1965 = vmatprep.mubr.bf16.mxu0 0
        %1966 = vmatmul.mubr.bf16.gmra.mxu0 %v1883
        %v1967 = vpop.f32.mrf.mxu0
        %v1968 = vadd.f32 0.0, %v1967
        %v1969 = vpop.f32.mrf.mxu0
        %v1970 = vpop.f32.mrf.mxu0
        %v1971 = vadd.f32 0.0, %v1970
        %v1972 = vpop.f32.mrf.mxu0
        %1973 = vdwg.mxu0
        %v1974 = vadd.f32 %v1842, %v1968
        %v1975 = vadd.f32 %v1843, %v1971
        %v1976 = vld [vmem:[#allocation2 + $0x4] sm:$0xe]
        %s1977 = scalar_lea.vmem [#allocation3], 896
        %v1978 = vld [vmem:[%s1977] sm:$0xf]
        %v1979 = vld [vmem:[%s1977 + $0x4] sm:$0xf]
        %v1980 = vld [vmem:[%s1977 + $0x8] sm:$0xf]
        %v1981 = vld [vmem:[%s1977 + $0xc] sm:$0xf]
        %v1982 = vld [vmem:[%s1977 + $0x10] sm:$0xf]
        %v1983 = vld [vmem:[%s1977 + $0x14] sm:$0xf]
        %v1984 = vld [vmem:[%s1977 + $0x18] sm:$0xf]
        %v1985 = vld [vmem:[%s1977 + $0x1c] sm:$0xf]
        %v1986 = vld [vmem:[%s1977 + $0x20] sm:$0xf]
        %v1987 = vld [vmem:[%s1977 + $0x24] sm:$0xf]
        %v1988 = vld [vmem:[%s1977 + $0x28] sm:$0xf]
        %v1989 = vld [vmem:[%s1977 + $0x2c] sm:$0xf]
        %v1990 = vld [vmem:[%s1977 + $0x30] sm:$0xf]
        %v1991 = vld [vmem:[%s1977 + $0x34] sm:$0xf]
        %v1992 = vld [vmem:[%s1977 + $0x38] sm:$0xf]
        %v1993 = vld [vmem:[%s1977 + $0x3c] sm:$0xf]
        %v1995 = vunpack.c.l.b16 %v1976
        %v1996 = vpack.c.b16 %v1868, %v1995
        %v1997 = vrot.slane %v1996, 1
        %v1998 = vrot.slane %v1871, 1
        %v1999 = vsel %vm707, %v1997, %v1998
        %v2017 = vunpack.c.l.b16 %v1978
        %v2018 = vunpack.c.l.b16 %v1979
        %v2019 = vunpack.c.l.b16 %v1980
        %v2020 = vunpack.c.l.b16 %v1981
        %v2021 = vunpack.c.l.b16 %v1982
        %v2022 = vunpack.c.l.b16 %v1983
        %v2023 = vunpack.c.l.b16 %v1984
        %v2024 = vunpack.c.l.b16 %v1985
        %v2025 = vunpack.c.l.b16 %v1986
        %v2026 = vunpack.c.l.b16 %v1987
        %v2027 = vunpack.c.l.b16 %v1988
        %v2028 = vunpack.c.l.b16 %v1989
        %v2029 = vunpack.c.l.b16 %v1990
        %v2030 = vunpack.c.l.b16 %v1991
        %v2031 = vunpack.c.l.b16 %v1992
        %v2032 = vunpack.c.l.b16 %v1993
        %v2033 = vpack.c.b16 %v2018, %v2017
        %v2034 = vpack.c.b16 %v2020, %v2019
        %v2035 = vpack.c.b16 %v2022, %v2021
        %v2036 = vpack.c.b16 %v2024, %v2023
        %v2037 = vpack.c.b16 %v2026, %v2025
        %v2038 = vpack.c.b16 %v2028, %v2027
        %v2039 = vpack.c.b16 %v2030, %v2029
        %v2040 = vpack.c.b16 %v2032, %v2031
        %2049 = vmatprep.subr.bf16.mxu0 0
        %2050 = vmatpush1.bf16.msra.mxu0 %v2040
        %2051 = vmatprep.subr.bf16.mxu0 0
        %2052 = vmatpush1.bf16.msra.mxu0 %v2039
        %2053 = vmatprep.subr.bf16.mxu0 0
        %2054 = vmatpush1.bf16.msra.mxu0 %v2038
        %2055 = vmatprep.subr.bf16.mxu0 0
        %2056 = vmatpush1.bf16.msra.mxu0 %v2037
        %2057 = vmatprep.subr.bf16.mxu0 0
        %2058 = vmatpush1.bf16.msra.mxu0 %v2036
        %2059 = vmatprep.subr.bf16.mxu0 0
        %2060 = vmatpush1.bf16.msra.mxu0 %v2035
        %2061 = vmatprep.subr.bf16.mxu0 0
        %2062 = vmatpush1.bf16.msra.mxu0 %v2034
        %2063 = vmatprep.subr.bf16.mxu0 0
        %2064 = vmatpush1.bf16.msra.mxu0 %v2033
        %2065 = vmatprep.subr.bf16.mxu0 0
        %2066 = vmatpush2.bf16.msra.mxu0 0
        %2067 = vmatprep.subr.bf16.mxu0 0
        %2068 = vmatpush2.bf16.msra.mxu0 0
        %2069 = vmatprep.subr.bf16.mxu0 0
        %2070 = vmatpush2.bf16.msra.mxu0 0
        %2071 = vmatprep.subr.bf16.mxu0 0
        %2072 = vmatpush2.bf16.msra.mxu0 0
        %2073 = vmatprep.subr.bf16.mxu0 0
        %2074 = vmatpush2.bf16.msra.mxu0 0
        %2075 = vmatprep.subr.bf16.mxu0 0
        %2076 = vmatpush2.bf16.msra.mxu0 0
        %2077 = vmatprep.subr.bf16.mxu0 0
        %2078 = vmatpush2.bf16.msra.mxu0 0
        %2079 = vmatprep.subr.bf16.mxu0 0
        %2080 = vmatpush2.bf16.msra.mxu0 0
        %2081 = vmatprep.mubr.bf16.mxu0 0
        %2082 = vmatmul.mubr.bf16.gmra.mxu0 %v1999
        %v2083 = vpop.f32.mrf.mxu0
        %v2084 = vadd.f32 0.0, %v2083
        %v2085 = vpop.f32.mrf.mxu0
        %v2086 = vpop.f32.mrf.mxu0
        %v2087 = vadd.f32 0.0, %v2086
        %v2088 = vpop.f32.mrf.mxu0
        %2089 = vdwg.mxu0
        %v2090 = vadd.f32 %v1974, %v2084
        %v2091 = vadd.f32 %v1975, %v2087
        %s2092 = scalar_lea.vmem %s2, 2
        %v2093 = vld [vmem:[%s2092] sm:$0x1]
        %v2095 = vlaneseq
        %v2096 = vshrl.u32 %v2095, 7
        %v2097 = vsub.s32 0, %v2096
        %v2098 = vrot.slane %v2093, %v2097
        %v2100 = vadd.f32 %v2090, %v2098
        %v2101 = vadd.f32 %v2091, %v2098
        %v2102 = vmin.f32 %v2100, 20.0
        %v2103 = vmin.f32 %v2101, 20.0
        %v2104 = vmul.f32 %v2102, 1.442695
        %v2105 = vpow.pop %v2104
        %v2106 = vmul.f32 %v2103, 1.442695
        %v2107 = vpow.pop %v2106
        %v2108 = vadd.f32 %v2105, 2.0
        %v2109 = vadd.f32 %v2107, 2.0
        %v2110 = vmul.f32 %v2105, %v2108
        %v2111 = vmul.f32 %v2107, %v2109
        %v2112 = vmul.f32 %v2100, %v2110
        %v2113 = vmul.f32 %v2101, %v2111
        %v2114 = vadd.f32 %v2110, 2.0
        %v2115 = vadd.f32 %v2111, 2.0
        %v2116 = vrcp.pop %v2114
        %v2117 = vrcp.pop %v2115
        %v2118 = vmul.f32 %v2112, %v2116
        %v2119 = vmul.f32 %v2113, %v2117
        %2120 = vst [vmem:[%s185] sm:$0xff] %v2118
        %2121 = vst [vmem:[%s185 + $0x8] sm:$0xff] %v2119
        %p2122 = scmp.lt.s32.totalorder %s15, 1
        %s2123 = scalar_select %p2122, %s15, 1
        %s2124 = smul.addr %s2123, 2
        %s2125 = smul.addr %s2124, 8
        %s2126 = scalar_lea.vmem %s3, %s2125
        // Predicated region
        $region37: #{local_temporal_extraction.1} parent=31 // pred_check
          %p2127 = pneg %p101
        $region38: #{local_temporal_extraction.1} parent=31 // pred_check_branch
          %2129 = sbr.rel (%p2127) target = $region40
        $region39: #{local_temporal_extraction.1} parent=31 // pred_region
          _
        $region40: #{local_temporal_extraction.1} parent=31 // pred_fallthru
          _
      $region32: #{local_temporal_extraction.1} parent=5 // pred_fallthru
        _
      %p2130 = scmp.le.s32.totalorder 2, %s10
      // Predicated region
      $region41: #{local_temporal_extraction.1} parent=5 // pred_check
        %p2131 = pneg %p2130
      $region42: #{local_temporal_extraction.1} parent=5 // pred_check_branch
        %2133 = sbr.rel (%p2131) target = $region44
      $region43: #{local_temporal_extraction.1} parent=5 // pred_region
        %s2134 = ssub.s32 %s10, 2
        // Predicated region
        $region45: #{local_temporal_extraction.1} parent=43 // pred_check
          %p2135 = pneg %p107
        $region46: #{local_temporal_extraction.1} parent=43 // pred_check_branch
          %2137 = sbr.rel (%p2135) target = $region48
        $region47: #{local_temporal_extraction.1} parent=43 // pred_region
          %p2138 = scmp.lt.s32.totalorder %s16, 1
          %s2139 = scalar_select %p2138, %s16, 1
          %s2140 = smul.addr %s2139, 2
          %s2141 = smul.addr %s2140, 8
          %s2142 = scalar_lea.vmem %s3, %s2141
        $region48: #{local_temporal_extraction.1} parent=43 // pred_fallthru
          _
      $region44: #{local_temporal_extraction.1} parent=5 // pred_fallthru
        _
    $region6: #{local_temporal_extraction.1} parent=1 // loop_footer
      %s14 = sadd.s32 1, %s10
    $region7: #{local_temporal_extraction.1} parent=1 // loop_footer_branch
      %9 = sbr.rel target = $region3
    $region8: #{local_temporal_extraction.1} parent=1 // loop_exit
      _
    %2143 = vsyncpa [#allocation4], 1
    %s2144 = scalar_lea.sflag [#allocation4], 1
    %2145 = vsyncpa %s2144, 1

</llo_original>
